<compile_context>
chip_gen: v7x
topology: tpu7x:2x2x1
jax: 0.10.0
libtpu: 0.0.40
codegen_flags: <defaults>
</compile_context>

<pallas_src>
import numpy as np
import jax
import jax.numpy as jnp
from jax import lax
from jax.experimental import pallas as pl
from jax.experimental.pallas import tpu as pltpu


# ----------------------------------------------------------------------------
# Parameter fusion (plain JAX, float32) — RepVGGBlock.get_equivalent_kernel_bias
# ----------------------------------------------------------------------------
def _fuse_conv_bn(w_oihw, bn):
    """Fold eval-mode BN into a conv weight (OIHW) and bias, in float32."""
    std = jnp.sqrt(bn["var"].astype(jnp.float32) + bn["eps"])
    t = bn["gamma"].astype(jnp.float32) / std
    w = w_oihw.astype(jnp.float32) * t[:, None, None, None]
    b = bn["beta"].astype(jnp.float32) - bn["mean"].astype(jnp.float32) * t
    return w, b


def get_equivalent_kernel_bias(params, in_channels, groups=1):
    """Returns (w_hwio (3,3,Cin,Cout), bias (Cout,)) in float32."""
    k3, b3 = _fuse_conv_bn(params["dense"]["w"], params["dense"]["bn"])
    k1, b1 = _fuse_conv_bn(params["one"]["w"], params["one"]["bn"])
    k = k3 + jnp.pad(k1, ((0, 0), (0, 0), (1, 1), (1, 1)))   # 1x1 -> 3x3 center
    b = b3 + b1
    if params.get("identity_bn") is not None:
        input_dim = in_channels // groups
        idw = np.zeros((in_channels, input_dim, 3, 3), np.float32)
        for i in range(in_channels):
            idw[i, i % input_dim, 1, 1] = 1.0
        kid, bid = _fuse_conv_bn(jnp.asarray(idw), params["identity_bn"])
        k = k + kid
        b = b + bid
    # OIHW -> HWIO
    return jnp.transpose(k, (2, 3, 1, 0)), b


# ----------------------------------------------------------------------------
# Pallas kernels: fused 3x3 conv (stride 1, pad 1) + bias + ReLU, NHWC
# ----------------------------------------------------------------------------
def _conv3x3_dxpacked_kernel(TH, W, Cin3, Cout_p):
    """Small-Cin path: dx is pre-packed into channels -> 3 matmuls with K=3*Cin."""
    M = TH * W

    def kernel(x_ref, w_ref, b_ref, o_ref):
        # x_ref: (Hp, W, Cin3)   dx-packed padded activation slab (resident per n)
        # w_ref: (3, Cin3, Cout_p) fused weights (resident for whole grid)
        # b_ref: (1, Cout_p)     f32 bias
        # o_ref: (M, Cout_p)     output tile (lane-dense)
        row0 = pl.multiple_of(pl.program_id(1) * TH, TH)

        def dy_dot(dy):
            # dy shift is along the leading (non-tiled) axis -> free address offset.
            patch = x_ref[pl.ds(row0 + dy, TH), :, :].reshape(M, Cin3)
            return jnp.dot(patch, w_ref[dy], preferred_element_type=jnp.float32)

        acc = dy_dot(0) + dy_dot(1) + dy_dot(2)
        o_ref[...] = jnp.maximum(acc + b_ref[...], 0.0).astype(o_ref.dtype)

    return kernel


def _conv3x3_taps_kernel(TH, W, Cin, Cout_p):
    """Wide-Cin path: 9 static tap slices, accumulate into an f32 VMEM scratch."""
    M = TH * W

    def kernel(x_ref, w_ref, b_ref, o_ref, acc_ref):
        # x_ref:   (Hp, Wp, Cin)    zero-padded activation slab (resident per n)
        # w_ref:   (9, Cin, Cout_p) fused taps (resident for whole grid)
        # b_ref:   (1, Cout_p)      f32 bias
        # o_ref:   (M, Cout_p)      output tile (lane-dense)
        # acc_ref: (M, Cout_p)      f32 VMEM accumulator
        row0 = pl.multiple_of(pl.program_id(1) * TH, TH)

        def tap(t):
            dy, dx = divmod(t, 3)
            patch = x_ref[pl.ds(row0 + dy, TH), pl.ds(dx, W), :]
            return jnp.dot(patch.reshape(M, Cin), w_ref[t],
                           preferred_element_type=jnp.float32)

        acc_ref[...] = tap(0)
        for t in range(1, 9):
            acc_ref[...] += tap(t)

        # Epilogue rides on the VPU under the MXU-bound tap loop.
        o_ref[...] = jnp.maximum(acc_ref[...] + b_ref[...], 0.0).astype(o_ref.dtype)

    return kernel


def _round_up(x, m):
    return (x + m - 1) // m * m


def _choose_th(H, W, Cout_p, out_bytes, budget=8 << 20):
    """Largest divisor of H whose acc + double-buffered output fits the budget.

    Also requires TH*W to be sublane-aligned (multiple of 8) unless TH == H
    (full output extent), so the output BlockSpec stays legal.
    """
    cands = [th for th in range(1, H + 1)
             if H % th == 0 and (th == H or (th * W) % 8 == 0)]
    best = cands[0]
    for th in cands:
        per_tile = th * W * Cout_p * (4 + 2 * out_bytes)
        if per_tile <= budget:
            best = th
    return best


def fused_conv3x3_bias_relu(x, w_hwio, bias, *, out_dtype=None):
    """y = relu(conv3x3(x, w, stride=1, pad=1) + bias).  x: NHWC, w: HWIO."""
    N, H, W, Cin = x.shape
    assert w_hwio.shape[:3] == (3, 3, Cin)
    Cout = w_hwio.shape[3]
    out_dtype = out_dtype or x.dtype

    Cin_p = _round_up(Cin, 8)       # sublane-friendly K
    Cout_p = _round_up(Cout, 128)   # lane-dense N -> unmasked vector stores

    x_bytes = jnp.dtype(x.dtype).itemsize
    out_bytes = jnp.dtype(out_dtype).itemsize

    bias_p = jnp.pad(bias.astype(jnp.float32), (0, Cout_p - Cout)).reshape(1, Cout_p)
    # Padded fused weights (3,3,Cin_p,Cout_p), cast to activation dtype for the MXU.
    w_p = jnp.pad(w_hwio,
                  ((0, 0), (0, 0), (0, Cin_p - Cin), (0, Cout_p - Cout))).astype(x.dtype)

    # Zero halo (pad=1) + channel pad in a single pad op.
    xpad = jnp.pad(x, ((0, 0), (1, 1), (1, 1), (0, Cin_p - Cin)))
    Hp, Wp = H + 2, W + 2

    TH = _choose_th(H, W, Cout_p, out_bytes)
    n_h = H // TH
    M = TH * W

    small_cin = Cin_p <= 32
    if small_cin:
        # dx-packed slab: channel order is (dx, cin) -> matches w_p.reshape below.
        Cin3 = 3 * Cin_p
        x_in = jnp.concatenate(
            [xpad[:, :, 0:W, :], xpad[:, :, 1:W + 1, :], xpad[:, :, 2:W + 2, :]],
            axis=-1)                                   # (N, Hp, W, 3*Cin_p)
        w_in = w_p.reshape(3, Cin3, Cout_p)            # [dy, dx*Cin_p + i, o]
        kernel = _conv3x3_dxpacked_kernel(TH, W, Cin3, Cout_p)
        in_specs = [
            # Packed slab: constant along the H-tile axis -> stays resident per n.
            pl.BlockSpec((None, Hp, W, Cin3), lambda n, h: (n, 0, 0, 0)),
            # Fused weights / bias: constant index_map -> DMA'd once for the grid.
            pl.BlockSpec((3, Cin3, Cout_p), lambda n, h: (0, 0, 0)),
            pl.BlockSpec((1, Cout_p), lambda n, h: (0, 0)),
        ]
        scratch = []
        est = (2 * Hp * W * Cin3 * x_bytes
               + 2 * (3 * Cin3 * Cout_p * x_bytes + Cout_p * 4)
               + 2 * M * Cout_p * out_bytes
               + 2 * M * Cout_p * 4)                   # headroom for acc spills
    else:
        x_in = xpad
        w_in = w_p.reshape(9, Cin_p, Cout_p)           # [dy*3+dx, i, o]
        kernel = _conv3x3_taps_kernel(TH, W, Cin_p, Cout_p)
        in_specs = [
            pl.BlockSpec((None, Hp, Wp, Cin_p), lambda n, h: (n, 0, 0, 0)),
            pl.BlockSpec((9, Cin_p, Cout_p), lambda n, h: (0, 0, 0)),
            pl.BlockSpec((1, Cout_p), lambda n, h: (0, 0)),
        ]
        scratch = [pltpu.VMEM((M, Cout_p), jnp.float32)]
        est = (2 * Hp * Wp * Cin_p * x_bytes
               + 2 * (9 * Cin_p * Cout_p * x_bytes + Cout_p * 4)
               + 2 * M * Cout_p * out_bytes
               + M * Cout_p * 4)

    # Explicit VMEM budget, capped at 64 MiB so the same tiling is safe on v7x.
    vmem_limit = int(min(64 << 20, max(32 << 20, 2 * est)))

    out_p = pl.pallas_call(
        kernel,
        out_shape=jax.ShapeDtypeStruct((N, H * W, Cout_p), out_dtype),
        grid=(N, n_h),
        in_specs=in_specs,
        out_specs=pl.BlockSpec((None, M, Cout_p), lambda n, h: (n, h, 0)),
        scratch_shapes=scratch,
        compiler_params=pltpu.CompilerParams(
            dimension_semantics=("parallel", "parallel"),
            vmem_limit_bytes=vmem_limit,
        ),
    )(x_in, w_in, bias_p)

    out = out_p[..., :Cout] if Cout_p != Cout else out_p
    return out.reshape(N, H, W, Cout)


# ----------------------------------------------------------------------------
# Public forward: eval-mode RepVGGBlock
# ----------------------------------------------------------------------------
def repvgg_block_forward(x_nhwc, params, *, stride=1, groups=1):
    """relu(rbr_dense(x) + rbr_1x1(x) + rbr_identity(x)), eval-mode BN, NHWC."""
    assert stride == 1 and groups == 1, "Pallas path supports stride=1, groups=1"
    N, H, W, Cin = x_nhwc.shape
    w_hwio, bias = get_equivalent_kernel_bias(params, Cin, groups)
    return fused_conv3x3_bias_relu(x_nhwc, w_hwio, bias)


# ----------------------------------------------------------------------------
# Pure-JAX reference of the un-fused three-branch block (eval mode)
# ----------------------------------------------------------------------------
def reference_repvgg_forward(x, params):
    def bn_eval(y, bn):
        scale = bn["gamma"].astype(jnp.float32) / jnp.sqrt(
            bn["var"].astype(jnp.float32) + bn["eps"])
        return (y - bn["mean"].astype(jnp.float32)) * scale + bn["beta"].astype(jnp.float32)

    xf = x.astype(jnp.float32)
    dn = ("NHWC", "OIHW", "NHWC")
    y3 = lax.conv_general_dilated(xf, params["dense"]["w"].astype(jnp.float32),
                                  (1, 1), ((1, 1), (1, 1)), dimension_numbers=dn)
    y1 = lax.conv_general_dilated(xf, params["one"]["w"].astype(jnp.float32),
                                  (1, 1), ((0, 0), (0, 0)), dimension_numbers=dn)
    out = bn_eval(y3, params["dense"]["bn"]) + bn_eval(y1, params["one"]["bn"])
    if params.get("identity_bn") is not None:
        out = out + bn_eval(xf, params["identity_bn"])
    return jnp.maximum(out, 0.0)


# ----------------------------------------------------------------------------
# Self-test
# ----------------------------------------------------------------------------
def _make_bn(k, c):
    k1, k2, k3, k4 = jax.random.split(k, 4)
    return dict(
        gamma=jax.random.uniform(k1, (c,), jnp.float32, 0.5, 1.5),
        beta=0.1 * jax.random.normal(k2, (c,), jnp.float32),
        mean=0.1 * jax.random.normal(k3, (c,), jnp.float32),
        var=jax.random.uniform(k4, (c,), jnp.float32, 0.5, 1.5),
        eps=1e-5,
    )


def _make_params(key, cin, cout):
    ks = jax.random.split(key, 5)
    return dict(
        dense=dict(w=0.2 * jax.random.normal(ks[0], (cout, cin, 3, 3), jnp.float32),
                   bn=_make_bn(ks[1], cout)),
        one=dict(w=0.2 * jax.random.normal(ks[2], (cout, cin, 1, 1), jnp.float32),
                 bn=_make_bn(ks[3], cout)),
        identity_bn=_make_bn(ks[4], cin) if cin == cout else None,
    )


def _run_case(key, N, H, W, Cin, Cout):
    kp, kx = jax.random.split(key)
    params = _make_params(kp, Cin, Cout)
    x = jax.random.normal(kx, (N, H, W, Cin), jnp.float32)   # NHWC activations
    y = jax.block_until_ready(jax.jit(repvgg_block_forward)(x, params))
    y_ref = reference_repvgg_forward(x, params)
    assert y.shape == (N, H, W, Cout)
    return float(jnp.max(jnp.abs(y.astype(jnp.float32) - y_ref)))


if __name__ == "__main__":
    key = jax.random.PRNGKey(0)
    k1, k2 = jax.random.split(key)
    errs = {
        # identity branch present, small-Cin dx-packed kernel path
        "small_cin_packed": _run_case(k1, 2, 16, 16, 4, 4),
        # no identity branch, wide-Cin 9-tap kernel path, Cout padded to 128
        "wide_cin_taps": _run_case(k2, 1, 8, 8, 40, 24),
    }
    for name, err in errs.items():
        if err > 1e-3:
            raise AssertionError(f"{name}: mismatch vs reference, max abs err = {err}")
    print("KERNEL_OK")
</pallas_src>

<mosaic_0001>
module attributes {stable_mosaic.version = 11 : i64} {
  func.func @kernel(%arg0: i32, %arg1: i32, %arg2: memref<1x18x16x24xf32, #tpu.memory_space<vmem>>, %arg3: memref<3x24x128xf32, #tpu.memory_space<vmem>>, %arg4: memref<1x128xf32, #tpu.memory_space<vmem>>, %arg5: memref<1x256x128xf32, #tpu.memory_space<vmem>>) attributes {dimension_semantics = [#tpu.dimension_semantics<parallel>, #tpu.dimension_semantics<parallel>], iteration_bounds = array<i64: 2, 1>, scalar_prefetch = 0 : i64, scratch_operands = 0 : i64, tpu.core_type = #tpu.core_type<tc>, window_params = [{transform_indices = @transform_0, window_bounds = array<i64: 1, 18, 16, 24>}, {pipeline_mode = #tpu.pipeline_mode<synchronous>, transform_indices = @transform_1, window_bounds = array<i64: 3, 24, 128>}, {pipeline_mode = #tpu.pipeline_mode<synchronous>, transform_indices = @transform_2, window_bounds = array<i64: 1, 128>}, {transform_indices = @transform_3, window_bounds = array<i64: 1, 256, 128>}]} {
    %c16_i32 = arith.constant 16 : i32
    %0 = arith.muli %arg1, %c16_i32 : i32
    %1 = tpu.assume_multiple %0, 16 : i32
    %c0_i32 = arith.constant 0 : i32
    %2 = arith.addi %1, %c0_i32 : i32
    %c0 = arith.constant 0 : index
    %3 = arith.index_cast %2 : i32 to index
    %c0_0 = arith.constant 0 : index
    %c0_1 = arith.constant 0 : index
    %4 = vector.load %arg2[%c0, %3, %c0_0, %c0_1] : memref<1x18x16x24xf32, #tpu.memory_space<vmem>>, vector<1x16x16x24xf32>
    %5 = vector.shape_cast %4 : vector<1x16x16x24xf32> to vector<16x16x24xf32>
    %6 = vector.shape_cast %5 : vector<16x16x24xf32> to vector<256x24xf32>
    %c0_2 = arith.constant 0 : index
    %c0_3 = arith.constant 0 : index
    %c0_4 = arith.constant 0 : index
    %7 = vector.load %arg3[%c0_2, %c0_3, %c0_4] : memref<3x24x128xf32, #tpu.memory_space<vmem>>, vector<1x24x128xf32>
    %8 = vector.shape_cast %7 : vector<1x24x128xf32> to vector<24x128xf32>
    %cst = arith.constant dense<0.000000e+00> : vector<256x128xf32>
    %9 = tpu.matmul %6, %8, %cst {dimension_numbers = #tpu.dot_dimension_numbers<[1], [0], [0], [1], [0, 0, 1, 1], [], []>} : vector<256x24xf32>, vector<24x128xf32>, vector<256x128xf32> -> vector<256x128xf32>
    %c1_i32 = arith.constant 1 : i32
    %10 = arith.addi %1, %c1_i32 : i32
    %c0_5 = arith.constant 0 : index
    %11 = arith.index_cast %10 : i32 to index
    %c0_6 = arith.constant 0 : index
    %c0_7 = arith.constant 0 : index
    %12 = vector.load %arg2[%c0_5, %11, %c0_6, %c0_7] : memref<1x18x16x24xf32, #tpu.memory_space<vmem>>, vector<1x16x16x24xf32>
    %13 = vector.shape_cast %12 : vector<1x16x16x24xf32> to vector<16x16x24xf32>
    %14 = vector.shape_cast %13 : vector<16x16x24xf32> to vector<256x24xf32>
    %c1 = arith.constant 1 : index
    %c0_8 = arith.constant 0 : index
    %c0_9 = arith.constant 0 : index
    %15 = vector.load %arg3[%c1, %c0_8, %c0_9] : memref<3x24x128xf32, #tpu.memory_space<vmem>>, vector<1x24x128xf32>
    %16 = vector.shape_cast %15 : vector<1x24x128xf32> to vector<24x128xf32>
    %cst_10 = arith.constant dense<0.000000e+00> : vector<256x128xf32>
    %17 = tpu.matmul %14, %16, %cst_10 {dimension_numbers = #tpu.dot_dimension_numbers<[1], [0], [0], [1], [0, 0, 1, 1], [], []>} : vector<256x24xf32>, vector<24x128xf32>, vector<256x128xf32> -> vector<256x128xf32>
    %18 = arith.addf %9, %17 : vector<256x128xf32>
    %c2_i32 = arith.constant 2 : i32
    %19 = arith.addi %1, %c2_i32 : i32
    %c0_11 = arith.constant 0 : index
    %20 = arith.index_cast %19 : i32 to index
    %c0_12 = arith.constant 0 : index
    %c0_13 = arith.constant 0 : index
    %21 = vector.load %arg2[%c0_11, %20, %c0_12, %c0_13] : memref<1x18x16x24xf32, #tpu.memory_space<vmem>>, vector<1x16x16x24xf32>
    %22 = vector.shape_cast %21 : vector<1x16x16x24xf32> to vector<16x16x24xf32>
    %23 = vector.shape_cast %22 : vector<16x16x24xf32> to vector<256x24xf32>
    %c2 = arith.constant 2 : index
    %c0_14 = arith.constant 0 : index
    %c0_15 = arith.constant 0 : index
    %24 = vector.load %arg3[%c2, %c0_14, %c0_15] : memref<3x24x128xf32, #tpu.memory_space<vmem>>, vector<1x24x128xf32>
    %25 = vector.shape_cast %24 : vector<1x24x128xf32> to vector<24x128xf32>
    %cst_16 = arith.constant dense<0.000000e+00> : vector<256x128xf32>
    %26 = tpu.matmul %23, %25, %cst_16 {dimension_numbers = #tpu.dot_dimension_numbers<[1], [0], [0], [1], [0, 0, 1, 1], [], []>} : vector<256x24xf32>, vector<24x128xf32>, vector<256x128xf32> -> vector<256x128xf32>
    %27 = arith.addf %18, %26 : vector<256x128xf32>
    %c0_17 = arith.constant 0 : index
    %c0_18 = arith.constant 0 : index
    %28 = vector.load %arg4[%c0_17, %c0_18] : memref<1x128xf32, #tpu.memory_space<vmem>>, vector<1x128xf32>
    %29 = vector.broadcast %28 : vector<1x128xf32> to vector<256x128xf32>
    %30 = arith.addf %27, %29 : vector<256x128xf32>
    %cst_19 = arith.constant 0.000000e+00 : f32
    %31 = vector.broadcast %cst_19 : f32 to vector<256x128xf32>
    %32 = arith.maximumf %30, %31 : vector<256x128xf32>
    %c0_20 = arith.constant 0 : index
    %c0_21 = arith.constant 0 : index
    %c0_22 = arith.constant 0 : index
    %33 = vector.load %arg5[%c0_20, %c0_21, %c0_22] : memref<1x256x128xf32, #tpu.memory_space<vmem>>, vector<1x256x128xf32>
    %34 = vector.shape_cast %33 : vector<1x256x128xf32> to vector<256x128xf32>
    %35 = vector.shape_cast %32 : vector<256x128xf32> to vector<1x256x128xf32>
    tpu.vector_store %arg5[%c0_20, %c0_21, %c0_22], %35 {strides = array<i32>} : memref<1x256x128xf32, #tpu.memory_space<vmem>>, vector<1x256x128xf32>,
    return
  }
  func.func @transform_0(%arg0: i32, %arg1: i32) -> (i32, i32, i32, i32) {
    %c0_i32 = arith.constant 0 : i32
    %c0_i32_0 = arith.constant 0 : i32
    %c0_i32_1 = arith.constant 0 : i32
    %c0_i32_2 = arith.constant 0 : i32
    return %arg0, %c0_i32, %c0_i32_0, %c0_i32_1 : i32, i32, i32, i32
  }
  func.func @transform_1(%arg0: i32, %arg1: i32) -> (i32, i32, i32) {
    %c0_i32 = arith.constant 0 : i32
    %c0_i32_0 = arith.constant 0 : i32
    %c0_i32_1 = arith.constant 0 : i32
    %c0_i32_2 = arith.constant 0 : i32
    return %c0_i32, %c0_i32_0, %c0_i32_1 : i32, i32, i32
  }
  func.func @transform_2(%arg0: i32, %arg1: i32) -> (i32, i32) {
    %c0_i32 = arith.constant 0 : i32
    %c0_i32_0 = arith.constant 0 : i32
    %c0_i32_1 = arith.constant 0 : i32
    return %c0_i32, %c0_i32_0 : i32, i32
  }
  func.func @transform_3(%arg0: i32, %arg1: i32) -> (i32, i32, i32) {
    %c0_i32 = arith.constant 0 : i32
    %c0_i32_0 = arith.constant 0 : i32
    return %arg0, %arg1, %c0_i32 : i32, i32, i32
  }
}

</mosaic_0001>

<llo_original>
// kernel: repvgg_block_forward.1
$region0: #{repvgg_block_forward.1}
  #allocation0 [shape = 'u32[]', space=smem, size = 0x4, offset = 0x4, fixed_abs, tag = 'smem constant byte address 0x4 - core index']
  #allocation1 [shape = 'u32[144,128]{1,0:T(1,128)}', space=vmem, size = 0x12000, scoped, tag = 'internal scratch']
  %s0 = inlined_call_operand.vmem [shape: f32[2,18,16,24], index: 0, kind: input, shape index: {}]
  %s1 = inlined_call_operand.vmem [shape: f32[3,24,128], index: 1, kind: input, shape index: {}]
  %s2 = inlined_call_operand.vmem [shape: f32[1,128], index: 2, kind: input, shape index: {}]
  %s3 = inlined_call_operand.vmem [shape: f32[2,256,128], index: 3, kind: output, shape index: {}]
  %s4 = sld [smem:[#allocation0]]
  $region45: #{repvgg_block_forward.1} parent=0
    _
  %s6 = ssub.s32 1, %s4
  %s7 = scalar_select 0, %s6, %s4
  loop: start=0, step=1, limit=4
  $region2: #{repvgg_block_forward.1} parent=0 // loop_pre_header
    _
  $region3: #{repvgg_block_forward.1} parent=0 // loop_header
    %s9 = sphi 0, %s13
    %p10 = scmp.ge.s32.totalorder %s9, 4
    %s16 = sphi 0, %s28
    %s17 = sphi 0, %s24
    %s18 = sphi 0, %s16
    %s19 = sphi 0, %s17
    %s20 = sphi 0, %s18
    %s21 = sphi 0, %s19
    %s31 = sphi 0, %s33
    %s34 = sphi 0, %s31
    %s35 = sphi 0, %s34
    %s51 = sphi 0, %s35
    %s55 = sphi 0, %s55
    %s57 = sphi 0, %s55
    %s58 = sphi 0, %s57
    %s72 = sphi 0, %s58
    %s76 = sphi 0, %s76
    %s78 = sphi 0, %s76
    %s79 = sphi 0, %s78
    %s93 = sphi 0, %s79
    %s101 = sphi 0, %s103
    %s104 = sphi 0, %s101
    %s105 = sphi 0, %s104
    %s121 = sphi 0, %s105
  $region4: #{repvgg_block_forward.1} parent=0 // loop_header_branch
    %12 = sbr.rel (%p10) target = $region8
  $region5: #{repvgg_block_forward.1} parent=0 // loop_body
    %s14 = ssub.s32 %s9, 1
    %s15 = ssub.s32 %s9, 2
    %s22 = sadd.s32 1, %s17
    %p23 = scmp.ge.s32.totalorder %s22, 1
    %s24 = scalar_select %p23, 0, %s22
    %s25 = sadd.s32 1, %s16
    %s26 = scalar_select %p23, %s25, %s16
    %p27 = scmp.ge.s32.totalorder %s26, 2
    %s28 = scalar_select %p27, 0, %s26
    %s29 = ssub.s32 %s16, %s28
    %p30 = scmp.eq.s32.totalorder %s29, 0
    %s32 = sadd.s32 %s31, 1
    %s33 = scalar_select %p30, %s31, %s32
    %p36 = pneg %p30
    %p37 = scmp.eq.s32.totalorder %s9, 1
    %p38 = por %p36, %p37
    %p39 = scmp.ne.s32.totalorder %s31, %s34
    %p40 = scmp.eq.s32.totalorder %s9, 0
    %p41 = por %p39, %p40
    %p42 = scmp.ne.s32.totalorder %s31, %s34
    %p43 = scmp.eq.s32.totalorder %s14, 1
    %p44 = por %p42, %p43
    %p45 = scmp.ne.s32.totalorder %s34, %s35
    %p46 = scmp.eq.s32.totalorder %s14, 0
    %p47 = por %p45, %p46
    %p48 = scmp.ne.s32.totalorder %s34, %s35
    %p49 = scmp.eq.s32.totalorder %s15, 1
    %p50 = por %p48, %p49
    %p52 = scmp.ne.s32.totalorder %s35, %s51
    %p53 = scmp.eq.s32.totalorder %s15, 0
    %p54 = por %p52, %p53
    %s56 = sadd.s32 %s55, 1
    %p59 = scmp.eq.s32.totalorder %s9, 1
    %p60 = scmp.ne.s32.totalorder %s55, %s57
    %p61 = scmp.eq.s32.totalorder %s9, 0
    %p62 = por %p60, %p61
    %p63 = scmp.ne.s32.totalorder %s55, %s57
    %p64 = scmp.eq.s32.totalorder %s14, 1
    %p65 = por %p63, %p64
    %p66 = scmp.ne.s32.totalorder %s57, %s58
    %p67 = scmp.eq.s32.totalorder %s14, 0
    %p68 = por %p66, %p67
    %p69 = scmp.ne.s32.totalorder %s57, %s58
    %p70 = scmp.eq.s32.totalorder %s15, 1
    %p71 = por %p69, %p70
    %p73 = scmp.ne.s32.totalorder %s58, %s72
    %p74 = scmp.eq.s32.totalorder %s15, 0
    %p75 = por %p73, %p74
    %s77 = sadd.s32 %s76, 1
    %p80 = scmp.eq.s32.totalorder %s9, 1
    %p81 = scmp.ne.s32.totalorder %s76, %s78
    %p82 = scmp.eq.s32.totalorder %s9, 0
    %p83 = por %p81, %p82
    %p84 = scmp.ne.s32.totalorder %s76, %s78
    %p85 = scmp.eq.s32.totalorder %s14, 1
    %p86 = por %p84, %p85
    %p87 = scmp.ne.s32.totalorder %s78, %s79
    %p88 = scmp.eq.s32.totalorder %s14, 0
    %p89 = por %p87, %p88
    %p90 = scmp.ne.s32.totalorder %s78, %s79
    %p91 = scmp.eq.s32.totalorder %s15, 1
    %p92 = por %p90, %p91
    %p94 = scmp.ne.s32.totalorder %s79, %s93
    %p95 = scmp.eq.s32.totalorder %s15, 0
    %p96 = por %p94, %p95
    %s97 = ssub.s32 %s16, %s28
    %s98 = ssub.s32 %s17, %s24
    %s99 = sor.u32 %s97, %s98
    %p100 = scmp.eq.s32.totalorder %s99, 0
    %s102 = sadd.s32 %s101, 1
    %s103 = scalar_select %p100, %s101, %s102
    %p106 = pneg %p100
    %p107 = scmp.eq.s32.totalorder %s9, 1
    %p108 = por %p106, %p107
    %p109 = scmp.ne.s32.totalorder %s101, %s104
    %p110 = scmp.eq.s32.totalorder %s9, 0
    %p111 = por %p109, %p110
    %p112 = scmp.ne.s32.totalorder %s101, %s104
    %p113 = scmp.eq.s32.totalorder %s14, 1
    %p114 = por %p112, %p113
    %p115 = scmp.ne.s32.totalorder %s104, %s105
    %p116 = scmp.eq.s32.totalorder %s14, 0
    %p117 = por %p115, %p116
    %p118 = scmp.ne.s32.totalorder %s104, %s105
    %p119 = scmp.eq.s32.totalorder %s15, 1
    %p120 = por %p118, %p119
    %p122 = scmp.ne.s32.totalorder %s105, %s121
    %p123 = scmp.eq.s32.totalorder %s15, 0
    %p124 = por %p122, %p123
    %p125 = scmp.le.s32.totalorder 1, %s9
    %p126 = scmp.lt.s32.totalorder %s9, 3
    %p127 = pnand %p125, %p126
    %p128 = pneg %p127
    // Predicated region
    $region9: #{repvgg_block_forward.1} parent=5 // pred_check
      _
    $region10: #{repvgg_block_forward.1} parent=5 // pred_check_branch
      %130 = sbr.rel (%p127) target = $region12
    $region11: #{repvgg_block_forward.1} parent=5 // pred_region
      %s131 = ssub.s32 %s9, 1
      // Predicated region
      $region13: #{repvgg_block_forward.1} parent=11 // pred_check
        %p132 = pneg %p68
      $region14: #{repvgg_block_forward.1} parent=11 // pred_check_branch
        %134 = sbr.rel (%p132) target = $region16
      $region15: #{repvgg_block_forward.1} parent=11 // pred_region
        _
      $region16: #{repvgg_block_forward.1} parent=11 // pred_fallthru
        _
      // Predicated region
      $region17: #{repvgg_block_forward.1} parent=11 // pred_check
        %p135 = pneg %p89
      $region18: #{repvgg_block_forward.1} parent=11 // pred_check_branch
        %137 = sbr.rel (%p135) target = $region20
      $region19: #{repvgg_block_forward.1} parent=11 // pred_region
        _
      $region20: #{repvgg_block_forward.1} parent=11 // pred_fallthru
        _
    $region12: #{repvgg_block_forward.1} parent=5 // pred_fallthru
      _
    %p138 = scmp.lt.s32.totalorder %s9, 2
    // Predicated region
    $region21: #{repvgg_block_forward.1} parent=5 // pred_check
      %p139 = pneg %p138
    $region22: #{repvgg_block_forward.1} parent=5 // pred_check_branch
      %141 = sbr.rel (%p139) target = $region24
    $region23: #{repvgg_block_forward.1} parent=5 // pred_region
      // Predicated region
      $region25: #{repvgg_block_forward.1} parent=23 // pred_check
        %p142 = pneg %p41
      $region26: #{repvgg_block_forward.1} parent=23 // pred_check_branch
        %144 = sbr.rel (%p142) target = $region28
      $region27: #{repvgg_block_forward.1} parent=23 // pred_region
        %p145 = scmp.lt.s32.totalorder %s16, 1
        %s146 = scalar_select %p145, %s16, 1
        %s147 = smul.addr %s146, 36
        %s148 = smul.addr %s147, 8
        %s149 = scalar_lea.vmem %s0, %s148
      $region28: #{repvgg_block_forward.1} parent=23 // pred_fallthru
        _
    $region24: #{repvgg_block_forward.1} parent=5 // pred_fallthru
      _
    %p150 = scmp.le.s32.totalorder 1, %s9
    %p151 = scmp.lt.s32.totalorder %s9, 3
    %p152 = pnand %p150, %p151
    %p153 = pneg %p152
    // Predicated region
    $region29: #{repvgg_block_forward.1} parent=5 // pred_check
      _
    $region30: #{repvgg_block_forward.1} parent=5 // pred_check_branch
      %155 = sbr.rel (%p152) target = $region32
    $region31: #{repvgg_block_forward.1} parent=5 // pred_region
      %s156 = ssub.s32 %s9, 1
      %p157 = scmp.lt.s32.totalorder %s18, 1
      %s158 = scalar_select %p157, %s18, 1
      %s159 = smul.addr %s158, 36
      %s160 = smul.addr %s159, 8
      %s161 = scalar_lea.vmem %s0, %s160
      %p162 = pneg %p47
      %p163 = pneg %p44
      %p164 = pneg %p68
      %p165 = pneg %p65
      %p166 = pneg %p89
      %p167 = pneg %p86
      %p168 = pneg %p117
      %p169 = pneg %p114
      %s170 = smul.u32 32, %s19
      %p171 = scmp.lt.s32.totalorder %s18, 1
      %s172 = scalar_select %p171, %s18, 1
      %p173 = scmp.lt.s32.totalorder %s170, 31
      %s174 = scalar_select %p173, %s170, 31
      %s175 = smul.addr %s172, 32
      %s176 = sadd.s32 %s174, %s175
      %s177 = smul.addr %s176, 8
      %s178 = scalar_lea.vmem %s3, %s177
      %p179 = scmp.lt.s32.totalorder %s18, 1
      %s180 = scalar_select %p179, %s18, 1
      %s181 = smul.addr %s180, 36
      %s182 = smul.addr %s181, 8
      %s183 = scalar_lea.vmem %s0, %s182
      %s184 = smul.u32 32, %s19
      %p185 = scmp.lt.s32.totalorder %s18, 1
      %s186 = scalar_select %p185, %s18, 1
      %p187 = scmp.lt.s32.totalorder %s184, 31
      %s188 = scalar_select %p187, %s184, 31
      %s189 = smul.addr %s186, 32
      %s190 = sadd.s32 %s188, %s189
      %s191 = smul.addr %s190, 8
      %s192 = scalar_lea.vmem %s3, %s191
      %s193 = smul.u32 32, %s19
      %s194 = smul.u32 %s19, 16
      %s195 = smul.u32 %s194, 16
      %s196 = scalar_lea.vmem %s183, %s195
      %v197 = vld [vmem:[%s196] sm:$0xff]
      %v198 = vld [vmem:[%s196 + $0x8] sm:$0xff]
      %v199 = vld [vmem:[%s196 + $0x10] sm:$0xff]
      %v200 = vld [vmem:[%s196 + $0x18] sm:$0xff]
      %v201 = vld [vmem:[%s196 + $0x20] sm:$0xff]
      %v202 = vld [vmem:[%s196 + $0x28] sm:$0xff]
      %v203 = vld [vmem:[%s196 + $0x30] sm:$0xff]
      %v204 = vld [vmem:[%s196 + $0x38] sm:$0xff]
      %v205 = vld [vmem:[%s196 + $0x40] sm:$0xff]
      %v206 = vld [vmem:[%s196 + $0x48] sm:$0xff]
      %v207 = vld [vmem:[%s196 + $0x50] sm:$0xff]
      %v208 = vld [vmem:[%s196 + $0x58] sm:$0xff]
      %v209 = vld [vmem:[%s196 + $0x60] sm:$0xff]
      %v210 = vld [vmem:[%s196 + $0x68] sm:$0xff]
      %v211 = vld [vmem:[%s196 + $0x70] sm:$0xff]
      %v212 = vld [vmem:[%s196 + $0x78] sm:$0xff]
      %v213 = vld [vmem:[%s196 + $0x80] sm:$0xff]
      %v214 = vld [vmem:[%s196 + $0x88] sm:$0xff]
      %v215 = vld [vmem:[%s196 + $0x90] sm:$0xff]
      %v216 = vld [vmem:[%s196 + $0x98] sm:$0xff]
      %v217 = vld [vmem:[%s196 + $0xa0] sm:$0xff]
      %v218 = vld [vmem:[%s196 + $0xa8] sm:$0xff]
      %v219 = vld [vmem:[%s196 + $0xb0] sm:$0xff]
      %v220 = vld [vmem:[%s196 + $0xb8] sm:$0xff]
      %v221 = vld [vmem:[%s196 + $0xc0] sm:$0xff]
      %v222 = vld [vmem:[%s196 + $0xc8] sm:$0xff]
      %v223 = vld [vmem:[%s196 + $0xd0] sm:$0xff]
      %v224 = vld [vmem:[%s196 + $0xd8] sm:$0xff]
      %v225 = vld [vmem:[%s196 + $0xe0] sm:$0xff]
      %v226 = vld [vmem:[%s196 + $0xe8] sm:$0xff]
      %v227 = vld [vmem:[%s196 + $0xf0] sm:$0xff]
      %v228 = vld [vmem:[%s196 + $0xf8] sm:$0xff]
      %v229 = vld [vmem:[%s1] sm:$0xff]
      %v230 = vld [vmem:[%s1 + $0x8] sm:$0xff]
      %v231 = vld [vmem:[%s1 + $0x10] sm:$0xff]
      %s232 = sadd.s32 %s194, 1
      %s233 = smul.u32 %s232, 16
      %s234 = scalar_lea.vmem %s183, %s233
      %v235 = vld [vmem:[%s234] sm:$0xff]
      %v236 = vld [vmem:[%s234 + $0x8] sm:$0xff]
      %v237 = vld [vmem:[%s234 + $0x10] sm:$0xff]
      %v238 = vld [vmem:[%s234 + $0x18] sm:$0xff]
      %v239 = vld [vmem:[%s234 + $0x20] sm:$0xff]
      %v240 = vld [vmem:[%s234 + $0x28] sm:$0xff]
      %v241 = vld [vmem:[%s234 + $0x30] sm:$0xff]
      %v242 = vld [vmem:[%s234 + $0x38] sm:$0xff]
      %v243 = vld [vmem:[%s234 + $0x40] sm:$0xff]
      %v244 = vld [vmem:[%s234 + $0x48] sm:$0xff]
      %v245 = vld [vmem:[%s234 + $0x50] sm:$0xff]
      %v246 = vld [vmem:[%s234 + $0x58] sm:$0xff]
      %v247 = vld [vmem:[%s234 + $0x60] sm:$0xff]
      %v248 = vld [vmem:[%s234 + $0x68] sm:$0xff]
      %v249 = vld [vmem:[%s234 + $0x70] sm:$0xff]
      %v250 = vld [vmem:[%s234 + $0x78] sm:$0xff]
      %v251 = vld [vmem:[%s234 + $0x80] sm:$0xff]
      %v252 = vld [vmem:[%s234 + $0x88] sm:$0xff]
      %v253 = vld [vmem:[%s234 + $0x90] sm:$0xff]
      %v254 = vld [vmem:[%s234 + $0x98] sm:$0xff]
      %v255 = vld [vmem:[%s234 + $0xa0] sm:$0xff]
      %v256 = vld [vmem:[%s234 + $0xa8] sm:$0xff]
      %v257 = vld [vmem:[%s234 + $0xb0] sm:$0xff]
      %v258 = vld [vmem:[%s234 + $0xb8] sm:$0xff]
      %v259 = vld [vmem:[%s234 + $0xc0] sm:$0xff]
      %v260 = vld [vmem:[%s234 + $0xc8] sm:$0xff]
      %v261 = vld [vmem:[%s234 + $0xd0] sm:$0xff]
      %v262 = vld [vmem:[%s234 + $0xd8] sm:$0xff]
      %v263 = vld [vmem:[%s234 + $0xe0] sm:$0xff]
      %v264 = vld [vmem:[%s234 + $0xe8] sm:$0xff]
      %v265 = vld [vmem:[%s234 + $0xf0] sm:$0xff]
      %v266 = vld [vmem:[%s234 + $0xf8] sm:$0xff]
      %s267 = scalar_lea.vmem %s1, 24
      %v268 = vld [vmem:[%s267] sm:$0xff]
      %v269 = vld [vmem:[%s267 + $0x8] sm:$0xff]
      %v270 = vld [vmem:[%s267 + $0x10] sm:$0xff]
      %vm271 = vcmask 195584
      %v273 = vsel %vm271, %v235, 0
      %v276 = vsel %vm271, %v236, 0
      %v279 = vsel %vm271, %v237, 0
      %v282 = vsel %vm271, %v238, 0
      %v285 = vsel %vm271, %v239, 0
      %v288 = vsel %vm271, %v240, 0
      %v291 = vsel %vm271, %v241, 0
      %v294 = vsel %vm271, %v242, 0
      %v297 = vsel %vm271, %v243, 0
      %v300 = vsel %vm271, %v244, 0
      %v303 = vsel %vm271, %v245, 0
      %v306 = vsel %vm271, %v246, 0
      %v309 = vsel %vm271, %v247, 0
      %v312 = vsel %vm271, %v248, 0
      %v315 = vsel %vm271, %v249, 0
      %v318 = vsel %vm271, %v250, 0
      %v321 = vsel %vm271, %v251, 0
      %v324 = vsel %vm271, %v252, 0
      %v327 = vsel %vm271, %v253, 0
      %v330 = vsel %vm271, %v254, 0
      %v333 = vsel %vm271, %v255, 0
      %v336 = vsel %vm271, %v256, 0
      %v339 = vsel %vm271, %v257, 0
      %v342 = vsel %vm271, %v258, 0
      %v345 = vsel %vm271, %v259, 0
      %v348 = vsel %vm271, %v260, 0
      %v351 = vsel %vm271, %v261, 0
      %v354 = vsel %vm271, %v262, 0
      %v357 = vsel %vm271, %v263, 0
      %v360 = vsel %vm271, %v264, 0
      %v363 = vsel %vm271, %v265, 0
      %v366 = vsel %vm271, %v266, 0
      %368 = vmatprep.subr.mxu0 0.0
      %369 = vmatpush1.msra.mxu0 %v268
      %370 = vmatprep.subr.mxu0 0.0
      %371 = vmatpush1.msra.mxu0 %v269
      %372 = vmatprep.subr.mxu0 0.0
      %373 = vmatpush1.msra.mxu0 %v270
      %374 = vmatprep.subr.mxu0 0.0
      %375 = vmatpush1.msra.mxu0 0.0
      %376 = vmatprep.subr.mxu0 0.0
      %377 = vmatpush1.msra.mxu0 0.0
      %378 = vmatprep.subr.mxu0 0.0
      %379 = vmatpush1.msra.mxu0 0.0
      %380 = vmatprep.subr.mxu0 0.0
      %381 = vmatpush1.msra.mxu0 0.0
      %382 = vmatprep.subr.mxu0 0.0
      %383 = vmatpush1.msra.mxu0 0.0
      %384 = vmatprep.subr.mxu0 0.0
      %385 = vmatpush1.msra.mxu0 0.0
      %386 = vmatprep.subr.mxu0 0.0
      %387 = vmatpush1.msra.mxu0 0.0
      %388 = vmatprep.subr.mxu0 0.0
      %389 = vmatpush1.msra.mxu0 0.0
      %390 = vmatprep.subr.mxu0 0.0
      %391 = vmatpush1.msra.mxu0 0.0
      %392 = vmatprep.subr.mxu0 0.0
      %393 = vmatpush1.msra.mxu0 0.0
      %394 = vmatprep.subr.mxu0 0.0
      %395 = vmatpush1.msra.mxu0 0.0
      %396 = vmatprep.subr.mxu0 0.0
      %397 = vmatpush1.msra.mxu0 0.0
      %398 = vmatprep.subr.mxu0 0.0
      %399 = vmatpush1.msra.mxu0 0.0
      %400 = vmatprep.subr.mxu0 0.0
      %401 = vmatpush1.msra.mxu0 0.0
      %402 = vmatprep.subr.mxu0 0.0
      %403 = vmatpush1.msra.mxu0 0.0
      %404 = vmatprep.subr.mxu0 0.0
      %405 = vmatpush1.msra.mxu0 0.0
      %406 = vmatprep.subr.mxu0 0.0
      %407 = vmatpush1.msra.mxu0 0.0
      %408 = vmatprep.subr.mxu0 0.0
      %409 = vmatpush1.msra.mxu0 0.0
      %410 = vmatprep.subr.mxu0 0.0
      %411 = vmatpush1.msra.mxu0 0.0
      %412 = vmatprep.subr.mxu0 0.0
      %413 = vmatpush1.msra.mxu0 0.0
      %414 = vmatprep.subr.mxu0 0.0
      %415 = vmatpush1.msra.mxu0 0.0
      %416 = vmatprep.subr.mxu0 0.0
      %417 = vmatpush1.msra.mxu0 0.0
      %418 = vmatprep.subr.mxu0 0.0
      %419 = vmatpush1.msra.mxu0 0.0
      %420 = vmatprep.subr.mxu0 0.0
      %421 = vmatpush1.msra.mxu0 0.0
      %422 = vmatprep.subr.mxu0 0.0
      %423 = vmatpush1.msra.mxu0 0.0
      %424 = vmatprep.subr.mxu0 0.0
      %425 = vmatpush1.msra.mxu0 0.0
      %426 = vmatprep.subr.mxu0 0.0
      %427 = vmatpush1.msra.mxu0 0.0
      %428 = vmatprep.subr.mxu0 0.0
      %429 = vmatpush1.msra.mxu0 0.0
      %430 = vmatprep.subr.mxu0 0.0
      %431 = vmatpush1.msra.mxu0 0.0
      %432 = vmatprep.mubr.f32.mxu0 0.0
      %433 = vmatmul.mubr.f32.gmra.mrb[0].mxu0 %v273
      %v434 = vpop.f32.mrb[0].mxu0
      %v435 = vadd.f32 0.0, %v434
      %v436 = vpop.f32.mrb[0].mxu0
      %437 = vmatprep.mubr.f32.mxu0 0.0
      %438 = vmatmul.mubr.f32.gmra.mrb[0].mxu0 %v276
      %v439 = vpop.f32.mrb[0].mxu0
      %v440 = vadd.f32 0.0, %v439
      %v441 = vpop.f32.mrb[0].mxu0
      %442 = vmatprep.mubr.f32.mxu0 0.0
      %443 = vmatmul.mubr.f32.gmra.mrb[0].mxu0 %v279
      %v444 = vpop.f32.mrb[0].mxu0
      %v445 = vadd.f32 0.0, %v444
      %v446 = vpop.f32.mrb[0].mxu0
      %447 = vmatprep.mubr.f32.mxu0 0.0
      %448 = vmatmul.mubr.f32.gmra.mrb[0].mxu0 %v282
      %v449 = vpop.f32.mrb[0].mxu0
      %v450 = vadd.f32 0.0, %v449
      %v451 = vpop.f32.mrb[0].mxu0
      %452 = vmatprep.mubr.f32.mxu0 0.0
      %453 = vmatmul.mubr.f32.gmra.mrb[0].mxu0 %v285
      %v454 = vpop.f32.mrb[0].mxu0
      %v455 = vadd.f32 0.0, %v454
      %v456 = vpop.f32.mrb[0].mxu0
      %457 = vmatprep.mubr.f32.mxu0 0.0
      %458 = vmatmul.mubr.f32.gmra.mrb[0].mxu0 %v288
      %v459 = vpop.f32.mrb[0].mxu0
      %v460 = vadd.f32 0.0, %v459
      %v461 = vpop.f32.mrb[0].mxu0
      %462 = vmatprep.mubr.f32.mxu0 0.0
      %463 = vmatmul.mubr.f32.gmra.mrb[0].mxu0 %v291
      %v464 = vpop.f32.mrb[0].mxu0
      %v465 = vadd.f32 0.0, %v464
      %v466 = vpop.f32.mrb[0].mxu0
      %467 = vmatprep.mubr.f32.mxu0 0.0
      %468 = vmatmul.mubr.f32.gmra.mrb[0].mxu0 %v294
      %v469 = vpop.f32.mrb[0].mxu0
      %v470 = vadd.f32 0.0, %v469
      %v471 = vpop.f32.mrb[0].mxu0
      %472 = vmatprep.mubr.f32.mxu0 0.0
      %473 = vmatmul.mubr.f32.gmra.mrb[0].mxu0 %v297
      %v474 = vpop.f32.mrb[0].mxu0
      %v475 = vadd.f32 0.0, %v474
      %v476 = vpop.f32.mrb[0].mxu0
      %477 = vmatprep.mubr.f32.mxu0 0.0
      %478 = vmatmul.mubr.f32.gmra.mrb[0].mxu0 %v300
      %v479 = vpop.f32.mrb[0].mxu0
      %v480 = vadd.f32 0.0, %v479
      %v481 = vpop.f32.mrb[0].mxu0
      %482 = vmatprep.mubr.f32.mxu0 0.0
      %483 = vmatmul.mubr.f32.gmra.mrb[0].mxu0 %v303
      %v484 = vpop.f32.mrb[0].mxu0
      %v485 = vadd.f32 0.0, %v484
      %v486 = vpop.f32.mrb[0].mxu0
      %487 = vmatprep.mubr.f32.mxu0 0.0
      %488 = vmatmul.mubr.f32.gmra.mrb[0].mxu0 %v306
      %v489 = vpop.f32.mrb[0].mxu0
      %v490 = vadd.f32 0.0, %v489
      %v491 = vpop.f32.mrb[0].mxu0
      %492 = vmatprep.mubr.f32.mxu0 0.0
      %493 = vmatmul.mubr.f32.gmra.mrb[0].mxu0 %v309
      %v494 = vpop.f32.mrb[0].mxu0
      %v495 = vadd.f32 0.0, %v494
      %v496 = vpop.f32.mrb[0].mxu0
      %497 = vmatprep.mubr.f32.mxu0 0.0
      %498 = vmatmul.mubr.f32.gmra.mrb[0].mxu0 %v312
      %v499 = vpop.f32.mrb[0].mxu0
      %v500 = vadd.f32 0.0, %v499
      %v501 = vpop.f32.mrb[0].mxu0
      %502 = vmatprep.mubr.f32.mxu0 0.0
      %503 = vmatmul.mubr.f32.gmra.mrb[0].mxu0 %v315
      %v504 = vpop.f32.mrb[0].mxu0
      %v505 = vadd.f32 0.0, %v504
      %v506 = vpop.f32.mrb[0].mxu0
      %507 = vmatprep.mubr.f32.mxu0 0.0
      %508 = vmatmul.mubr.f32.gmra.mrb[0].mxu0 %v318
      %v509 = vpop.f32.mrb[0].mxu0
      %v510 = vadd.f32 0.0, %v509
      %v511 = vpop.f32.mrb[0].mxu0
      %512 = vmatprep.mubr.f32.mxu0 0.0
      %513 = vmatmul.mubr.f32.gmra.mrb[0].mxu0 %v321
      %v514 = vpop.f32.mrb[0].mxu0
      %v515 = vadd.f32 0.0, %v514
      %v516 = vpop.f32.mrb[0].mxu0
      %517 = vmatprep.mubr.f32.mxu0 0.0
      %518 = vmatmul.mubr.f32.gmra.mrb[0].mxu0 %v324
      %v519 = vpop.f32.mrb[0].mxu0
      %v520 = vadd.f32 0.0, %v519
      %v521 = vpop.f32.mrb[0].mxu0
      %522 = vmatprep.mubr.f32.mxu0 0.0
      %523 = vmatmul.mubr.f32.gmra.mrb[0].mxu0 %v327
      %v524 = vpop.f32.mrb[0].mxu0
      %v525 = vadd.f32 0.0, %v524
      %v526 = vpop.f32.mrb[0].mxu0
      %527 = vmatprep.mubr.f32.mxu0 0.0
      %528 = vmatmul.mubr.f32.gmra.mrb[0].mxu0 %v330
      %v529 = vpop.f32.mrb[0].mxu0
      %v530 = vadd.f32 0.0, %v529
      %v531 = vpop.f32.mrb[0].mxu0
      %532 = vmatprep.mubr.f32.mxu0 0.0
      %533 = vmatmul.mubr.f32.gmra.mrb[0].mxu0 %v333
      %v534 = vpop.f32.mrb[0].mxu0
      %v535 = vadd.f32 0.0, %v534
      %v536 = vpop.f32.mrb[0].mxu0
      %537 = vmatprep.mubr.f32.mxu0 0.0
      %538 = vmatmul.mubr.f32.gmra.mrb[0].mxu0 %v336
      %v539 = vpop.f32.mrb[0].mxu0
      %v540 = vadd.f32 0.0, %v539
      %v541 = vpop.f32.mrb[0].mxu0
      %542 = vmatprep.mubr.f32.mxu0 0.0
      %543 = vmatmul.mubr.f32.gmra.mrb[0].mxu0 %v339
      %v544 = vpop.f32.mrb[0].mxu0
      %v545 = vadd.f32 0.0, %v544
      %v546 = vpop.f32.mrb[0].mxu0
      %547 = vmatprep.mubr.f32.mxu0 0.0
      %548 = vmatmul.mubr.f32.gmra.mrb[0].mxu0 %v342
      %v549 = vpop.f32.mrb[0].mxu0
      %v550 = vadd.f32 0.0, %v549
      %v551 = vpop.f32.mrb[0].mxu0
      %552 = vmatprep.mubr.f32.mxu0 0.0
      %553 = vmatmul.mubr.f32.gmra.mrb[0].mxu0 %v345
      %v554 = vpop.f32.mrb[0].mxu0
      %v555 = vadd.f32 0.0, %v554
      %v556 = vpop.f32.mrb[0].mxu0
      %557 = vmatprep.mubr.f32.mxu0 0.0
      %558 = vmatmul.mubr.f32.gmra.mrb[0].mxu0 %v348
      %v559 = vpop.f32.mrb[0].mxu0
      %v560 = vadd.f32 0.0, %v559
      %v561 = vpop.f32.mrb[0].mxu0
      %562 = vmatprep.mubr.f32.mxu0 0.0
      %563 = vmatmul.mubr.f32.gmra.mrb[0].mxu0 %v351
      %v564 = vpop.f32.mrb[0].mxu0
      %v565 = vadd.f32 0.0, %v564
      %v566 = vpop.f32.mrb[0].mxu0
      %567 = vmatprep.mubr.f32.mxu0 0.0
      %568 = vmatmul.mubr.f32.gmra.mrb[0].mxu0 %v354
      %v569 = vpop.f32.mrb[0].mxu0
      %v570 = vadd.f32 0.0, %v569
      %v571 = vpop.f32.mrb[0].mxu0
      %572 = vmatprep.mubr.f32.mxu0 0.0
      %573 = vmatmul.mubr.f32.gmra.mrb[0].mxu0 %v357
      %v574 = vpop.f32.mrb[0].mxu0
      %v575 = vadd.f32 0.0, %v574
      %v576 = vpop.f32.mrb[0].mxu0
      %577 = vmatprep.mubr.f32.mxu0 0.0
      %578 = vmatmul.mubr.f32.gmra.mrb[0].mxu0 %v360
      %v579 = vpop.f32.mrb[0].mxu0
      %v580 = vadd.f32 0.0, %v579
      %v581 = vpop.f32.mrb[0].mxu0
      %582 = vmatprep.mubr.f32.mxu0 0.0
      %583 = vmatmul.mubr.f32.gmra.mrb[0].mxu0 %v363
      %v584 = vpop.f32.mrb[0].mxu0
      %v585 = vadd.f32 0.0, %v584
      %v586 = vpop.f32.mrb[0].mxu0
      %587 = vmatprep.mubr.f32.mxu0 0.0
      %588 = vmatmul.mubr.f32.gmra.mrb[0].mxu0 %v366
      %v589 = vpop.f32.mrb[0].mxu0
      %v590 = vadd.f32 0.0, %v589
      %v591 = vpop.f32.mrb[0].mxu0
      %592 = vdwg.mxu0
      %v594 = vsel %vm271, %v197, 0
      %v597 = vsel %vm271, %v198, 0
      %v600 = vsel %vm271, %v199, 0
      %v603 = vsel %vm271, %v200, 0
      %v606 = vsel %vm271, %v201, 0
      %v609 = vsel %vm271, %v202, 0
      %v612 = vsel %vm271, %v203, 0
      %v615 = vsel %vm271, %v204, 0
      %v618 = vsel %vm271, %v205, 0
      %v621 = vsel %vm271, %v206, 0
      %v624 = vsel %vm271, %v207, 0
      %v627 = vsel %vm271, %v208, 0
      %v630 = vsel %vm271, %v209, 0
      %v633 = vsel %vm271, %v210, 0
      %v636 = vsel %vm271, %v211, 0
      %v639 = vsel %vm271, %v212, 0
      %v642 = vsel %vm271, %v213, 0
      %v645 = vsel %vm271, %v214, 0
      %v648 = vsel %vm271, %v215, 0
      %v651 = vsel %vm271, %v216, 0
      %v654 = vsel %vm271, %v217, 0
      %v657 = vsel %vm271, %v218, 0
      %v660 = vsel %vm271, %v219, 0
      %v663 = vsel %vm271, %v220, 0
      %v666 = vsel %vm271, %v221, 0
      %v669 = vsel %vm271, %v222, 0
      %v672 = vsel %vm271, %v223, 0
      %v675 = vsel %vm271, %v224, 0
      %v678 = vsel %vm271, %v225, 0
      %v681 = vsel %vm271, %v226, 0
      %v684 = vsel %vm271, %v227, 0
      %v687 = vsel %vm271, %v228, 0
      %689 = vmatprep.subr.mxu0 0.0
      %690 = vmatpush1.msra.mxu0 %v229
      %691 = vmatprep.subr.mxu0 0.0
      %692 = vmatpush1.msra.mxu0 %v230
      %693 = vmatprep.subr.mxu0 0.0
      %694 = vmatpush1.msra.mxu0 %v231
      %695 = vmatprep.subr.mxu0 0.0
      %696 = vmatpush1.msra.mxu0 0.0
      %697 = vmatprep.subr.mxu0 0.0
      %698 = vmatpush1.msra.mxu0 0.0
      %699 = vmatprep.subr.mxu0 0.0
      %700 = vmatpush1.msra.mxu0 0.0
      %701 = vmatprep.subr.mxu0 0.0
      %702 = vmatpush1.msra.mxu0 0.0
      %703 = vmatprep.subr.mxu0 0.0
      %704 = vmatpush1.msra.mxu0 0.0
      %705 = vmatprep.subr.mxu0 0.0
      %706 = vmatpush1.msra.mxu0 0.0
      %707 = vmatprep.subr.mxu0 0.0
      %708 = vmatpush1.msra.mxu0 0.0
      %709 = vmatprep.subr.mxu0 0.0
      %710 = vmatpush1.msra.mxu0 0.0
      %711 = vmatprep.subr.mxu0 0.0
      %712 = vmatpush1.msra.mxu0 0.0
      %713 = vmatprep.subr.mxu0 0.0
      %714 = vmatpush1.msra.mxu0 0.0
      %715 = vmatprep.subr.mxu0 0.0
      %716 = vmatpush1.msra.mxu0 0.0
      %717 = vmatprep.subr.mxu0 0.0
      %718 = vmatpush1.msra.mxu0 0.0
      %719 = vmatprep.subr.mxu0 0.0
      %720 = vmatpush1.msra.mxu0 0.0
      %721 = vmatprep.subr.mxu0 0.0
      %722 = vmatpush1.msra.mxu0 0.0
      %723 = vmatprep.subr.mxu0 0.0
      %724 = vmatpush1.msra.mxu0 0.0
      %725 = vmatprep.subr.mxu0 0.0
      %726 = vmatpush1.msra.mxu0 0.0
      %727 = vmatprep.subr.mxu0 0.0
      %728 = vmatpush1.msra.mxu0 0.0
      %729 = vmatprep.subr.mxu0 0.0
      %730 = vmatpush1.msra.mxu0 0.0
      %731 = vmatprep.subr.mxu0 0.0
      %732 = vmatpush1.msra.mxu0 0.0
      %733 = vmatprep.subr.mxu0 0.0
      %734 = vmatpush1.msra.mxu0 0.0
      %735 = vmatprep.subr.mxu0 0.0
      %736 = vmatpush1.msra.mxu0 0.0
      %737 = vmatprep.subr.mxu0 0.0
      %738 = vmatpush1.msra.mxu0 0.0
      %739 = vmatprep.subr.mxu0 0.0
      %740 = vmatpush1.msra.mxu0 0.0
      %741 = vmatprep.subr.mxu0 0.0
      %742 = vmatpush1.msra.mxu0 0.0
      %743 = vmatprep.subr.mxu0 0.0
      %744 = vmatpush1.msra.mxu0 0.0
      %745 = vmatprep.subr.mxu0 0.0
      %746 = vmatpush1.msra.mxu0 0.0
      %747 = vmatprep.subr.mxu0 0.0
      %748 = vmatpush1.msra.mxu0 0.0
      %749 = vmatprep.subr.mxu0 0.0
      %750 = vmatpush1.msra.mxu0 0.0
      %751 = vmatprep.subr.mxu0 0.0
      %752 = vmatpush1.msra.mxu0 0.0
      %753 = vmatprep.mubr.f32.mxu0 0.0
      %754 = vmatmul.mubr.f32.gmra.mrb[0].mxu0 %v594
      %v755 = vpop.f32.mrb[0].mxu0
      %v756 = vadd.f32 %v435, %v755
      %v757 = vpop.f32.mrb[0].mxu0
      %758 = vmatprep.mubr.f32.mxu0 0.0
      %759 = vmatmul.mubr.f32.gmra.mrb[0].mxu0 %v597
      %v760 = vpop.f32.mrb[0].mxu0
      %v761 = vadd.f32 %v440, %v760
      %v762 = vpop.f32.mrb[0].mxu0
      %763 = vmatprep.mubr.f32.mxu0 0.0
      %764 = vmatmul.mubr.f32.gmra.mrb[0].mxu0 %v600
      %v765 = vpop.f32.mrb[0].mxu0
      %v766 = vadd.f32 %v445, %v765
      %v767 = vpop.f32.mrb[0].mxu0
      %768 = vmatprep.mubr.f32.mxu0 0.0
      %769 = vmatmul.mubr.f32.gmra.mrb[0].mxu0 %v603
      %v770 = vpop.f32.mrb[0].mxu0
      %v771 = vadd.f32 %v450, %v770
      %v772 = vpop.f32.mrb[0].mxu0
      %773 = vmatprep.mubr.f32.mxu0 0.0
      %774 = vmatmul.mubr.f32.gmra.mrb[0].mxu0 %v606
      %v775 = vpop.f32.mrb[0].mxu0
      %v776 = vadd.f32 %v455, %v775
      %v777 = vpop.f32.mrb[0].mxu0
      %778 = vmatprep.mubr.f32.mxu0 0.0
      %779 = vmatmul.mubr.f32.gmra.mrb[0].mxu0 %v609
      %v780 = vpop.f32.mrb[0].mxu0
      %v781 = vadd.f32 %v460, %v780
      %v782 = vpop.f32.mrb[0].mxu0
      %783 = vmatprep.mubr.f32.mxu0 0.0
      %784 = vmatmul.mubr.f32.gmra.mrb[0].mxu0 %v612
      %v785 = vpop.f32.mrb[0].mxu0
      %v786 = vadd.f32 %v465, %v785
      %v787 = vpop.f32.mrb[0].mxu0
      %788 = vmatprep.mubr.f32.mxu0 0.0
      %789 = vmatmul.mubr.f32.gmra.mrb[0].mxu0 %v615
      %v790 = vpop.f32.mrb[0].mxu0
      %v791 = vadd.f32 %v470, %v790
      %v792 = vpop.f32.mrb[0].mxu0
      %793 = vmatprep.mubr.f32.mxu0 0.0
      %794 = vmatmul.mubr.f32.gmra.mrb[0].mxu0 %v618
      %v795 = vpop.f32.mrb[0].mxu0
      %v796 = vadd.f32 %v475, %v795
      %v797 = vpop.f32.mrb[0].mxu0
      %798 = vmatprep.mubr.f32.mxu0 0.0
      %799 = vmatmul.mubr.f32.gmra.mrb[0].mxu0 %v621
      %v800 = vpop.f32.mrb[0].mxu0
      %v801 = vadd.f32 %v480, %v800
      %v802 = vpop.f32.mrb[0].mxu0
      %803 = vmatprep.mubr.f32.mxu0 0.0
      %804 = vmatmul.mubr.f32.gmra.mrb[0].mxu0 %v624
      %v805 = vpop.f32.mrb[0].mxu0
      %v806 = vadd.f32 %v485, %v805
      %v807 = vpop.f32.mrb[0].mxu0
      %808 = vmatprep.mubr.f32.mxu0 0.0
      %809 = vmatmul.mubr.f32.gmra.mrb[0].mxu0 %v627
      %v810 = vpop.f32.mrb[0].mxu0
      %v811 = vadd.f32 %v490, %v810
      %v812 = vpop.f32.mrb[0].mxu0
      %813 = vmatprep.mubr.f32.mxu0 0.0
      %814 = vmatmul.mubr.f32.gmra.mrb[0].mxu0 %v630
      %v815 = vpop.f32.mrb[0].mxu0
      %v816 = vadd.f32 %v495, %v815
      %v817 = vpop.f32.mrb[0].mxu0
      %818 = vmatprep.mubr.f32.mxu0 0.0
      %819 = vmatmul.mubr.f32.gmra.mrb[0].mxu0 %v633
      %v820 = vpop.f32.mrb[0].mxu0
      %v821 = vadd.f32 %v500, %v820
      %v822 = vpop.f32.mrb[0].mxu0
      %823 = vmatprep.mubr.f32.mxu0 0.0
      %824 = vmatmul.mubr.f32.gmra.mrb[0].mxu0 %v636
      %v825 = vpop.f32.mrb[0].mxu0
      %v826 = vadd.f32 %v505, %v825
      %v827 = vpop.f32.mrb[0].mxu0
      %828 = vmatprep.mubr.f32.mxu0 0.0
      %829 = vmatmul.mubr.f32.gmra.mrb[0].mxu0 %v639
      %v830 = vpop.f32.mrb[0].mxu0
      %v831 = vadd.f32 %v510, %v830
      %v832 = vpop.f32.mrb[0].mxu0
      %833 = vmatprep.mubr.f32.mxu0 0.0
      %834 = vmatmul.mubr.f32.gmra.mrb[0].mxu0 %v642
      %v835 = vpop.f32.mrb[0].mxu0
      %v836 = vadd.f32 %v515, %v835
      %v837 = vpop.f32.mrb[0].mxu0
      %838 = vmatprep.mubr.f32.mxu0 0.0
      %839 = vmatmul.mubr.f32.gmra.mrb[0].mxu0 %v645
      %v840 = vpop.f32.mrb[0].mxu0
      %v841 = vadd.f32 %v520, %v840
      %v842 = vpop.f32.mrb[0].mxu0
      %843 = vmatprep.mubr.f32.mxu0 0.0
      %844 = vmatmul.mubr.f32.gmra.mrb[0].mxu0 %v648
      %v845 = vpop.f32.mrb[0].mxu0
      %v846 = vadd.f32 %v525, %v845
      %v847 = vpop.f32.mrb[0].mxu0
      %848 = vmatprep.mubr.f32.mxu0 0.0
      %849 = vmatmul.mubr.f32.gmra.mrb[0].mxu0 %v651
      %v850 = vpop.f32.mrb[0].mxu0
      %v851 = vadd.f32 %v530, %v850
      %v852 = vpop.f32.mrb[0].mxu0
      %853 = vmatprep.mubr.f32.mxu0 0.0
      %854 = vmatmul.mubr.f32.gmra.mrb[0].mxu0 %v654
      %v855 = vpop.f32.mrb[0].mxu0
      %v856 = vadd.f32 %v535, %v855
      %v857 = vpop.f32.mrb[0].mxu0
      %858 = vmatprep.mubr.f32.mxu0 0.0
      %859 = vmatmul.mubr.f32.gmra.mrb[0].mxu0 %v657
      %v860 = vpop.f32.mrb[0].mxu0
      %v861 = vadd.f32 %v540, %v860
      %v862 = vpop.f32.mrb[0].mxu0
      %863 = vmatprep.mubr.f32.mxu0 0.0
      %864 = vmatmul.mubr.f32.gmra.mrb[0].mxu0 %v660
      %v865 = vpop.f32.mrb[0].mxu0
      %v866 = vadd.f32 %v545, %v865
      %v867 = vpop.f32.mrb[0].mxu0
      %868 = vmatprep.mubr.f32.mxu0 0.0
      %869 = vmatmul.mubr.f32.gmra.mrb[0].mxu0 %v663
      %v870 = vpop.f32.mrb[0].mxu0
      %v871 = vadd.f32 %v550, %v870
      %v872 = vpop.f32.mrb[0].mxu0
      %873 = vmatprep.mubr.f32.mxu0 0.0
      %874 = vmatmul.mubr.f32.gmra.mrb[0].mxu0 %v666
      %v875 = vpop.f32.mrb[0].mxu0
      %v876 = vadd.f32 %v555, %v875
      %v877 = vpop.f32.mrb[0].mxu0
      %878 = vmatprep.mubr.f32.mxu0 0.0
      %879 = vmatmul.mubr.f32.gmra.mrb[0].mxu0 %v669
      %v880 = vpop.f32.mrb[0].mxu0
      %v881 = vadd.f32 %v560, %v880
      %v882 = vpop.f32.mrb[0].mxu0
      %883 = vmatprep.mubr.f32.mxu0 0.0
      %884 = vmatmul.mubr.f32.gmra.mrb[0].mxu0 %v672
      %v885 = vpop.f32.mrb[0].mxu0
      %v886 = vadd.f32 %v565, %v885
      %v887 = vpop.f32.mrb[0].mxu0
      %888 = vmatprep.mubr.f32.mxu0 0.0
      %889 = vmatmul.mubr.f32.gmra.mrb[0].mxu0 %v675
      %v890 = vpop.f32.mrb[0].mxu0
      %v891 = vadd.f32 %v570, %v890
      %v892 = vpop.f32.mrb[0].mxu0
      %893 = vmatprep.mubr.f32.mxu0 0.0
      %894 = vmatmul.mubr.f32.gmra.mrb[0].mxu0 %v678
      %v895 = vpop.f32.mrb[0].mxu0
      %v896 = vadd.f32 %v575, %v895
      %v897 = vpop.f32.mrb[0].mxu0
      %898 = vmatprep.mubr.f32.mxu0 0.0
      %899 = vmatmul.mubr.f32.gmra.mrb[0].mxu0 %v681
      %v900 = vpop.f32.mrb[0].mxu0
      %v901 = vadd.f32 %v580, %v900
      %v902 = vpop.f32.mrb[0].mxu0
      %903 = vmatprep.mubr.f32.mxu0 0.0
      %904 = vmatmul.mubr.f32.gmra.mrb[0].mxu0 %v684
      %v905 = vpop.f32.mrb[0].mxu0
      %v906 = vadd.f32 %v585, %v905
      %v907 = vpop.f32.mrb[0].mxu0
      %908 = vmatprep.mubr.f32.mxu0 0.0
      %909 = vmatmul.mubr.f32.gmra.mrb[0].mxu0 %v687
      %v910 = vpop.f32.mrb[0].mxu0
      %v911 = vadd.f32 %v590, %v910
      %v912 = vpop.f32.mrb[0].mxu0
      %913 = vdwg.mxu0
      %s914 = sadd.s32 %s194, 2
      %s915 = smul.u32 %s914, 16
      %s916 = scalar_lea.vmem %s183, %s915
      %v917 = vld [vmem:[%s916] sm:$0xff]
      %v918 = vld [vmem:[%s916 + $0x8] sm:$0xff]
      %v919 = vld [vmem:[%s916 + $0x10] sm:$0xff]
      %v920 = vld [vmem:[%s916 + $0x18] sm:$0xff]
      %v921 = vld [vmem:[%s916 + $0x20] sm:$0xff]
      %v922 = vld [vmem:[%s916 + $0x28] sm:$0xff]
      %v923 = vld [vmem:[%s916 + $0x30] sm:$0xff]
      %v924 = vld [vmem:[%s916 + $0x38] sm:$0xff]
      %v925 = vld [vmem:[%s916 + $0x40] sm:$0xff]
      %v926 = vld [vmem:[%s916 + $0x48] sm:$0xff]
      %v927 = vld [vmem:[%s916 + $0x50] sm:$0xff]
      %v928 = vld [vmem:[%s916 + $0x58] sm:$0xff]
      %v929 = vld [vmem:[%s916 + $0x60] sm:$0xff]
      %v930 = vld [vmem:[%s916 + $0x68] sm:$0xff]
      %v931 = vld [vmem:[%s916 + $0x70] sm:$0xff]
      %v932 = vld [vmem:[%s916 + $0x78] sm:$0xff]
      %v933 = vld [vmem:[%s916 + $0x80] sm:$0xff]
      %v934 = vld [vmem:[%s916 + $0x88] sm:$0xff]
      %v935 = vld [vmem:[%s916 + $0x90] sm:$0xff]
      %v936 = vld [vmem:[%s916 + $0x98] sm:$0xff]
      %v937 = vld [vmem:[%s916 + $0xa0] sm:$0xff]
      %v938 = vld [vmem:[%s916 + $0xa8] sm:$0xff]
      %v939 = vld [vmem:[%s916 + $0xb0] sm:$0xff]
      %v940 = vld [vmem:[%s916 + $0xb8] sm:$0xff]
      %v941 = vld [vmem:[%s916 + $0xc0] sm:$0xff]
      %v942 = vld [vmem:[%s916 + $0xc8] sm:$0xff]
      %v943 = vld [vmem:[%s916 + $0xd0] sm:$0xff]
      %v944 = vld [vmem:[%s916 + $0xd8] sm:$0xff]
      %v945 = vld [vmem:[%s916 + $0xe0] sm:$0xff]
      %v946 = vld [vmem:[%s916 + $0xe8] sm:$0xff]
      %v947 = vld [vmem:[%s916 + $0xf0] sm:$0xff]
      %v948 = vld [vmem:[%s916 + $0xf8] sm:$0xff]
      %s949 = scalar_lea.vmem %s1, 48
      %v950 = vld [vmem:[%s949] sm:$0xff]
      %v951 = vld [vmem:[%s949 + $0x8] sm:$0xff]
      %v952 = vld [vmem:[%s949 + $0x10] sm:$0xff]
      %v954 = vsel %vm271, %v917, 0
      %v957 = vsel %vm271, %v918, 0
      %v960 = vsel %vm271, %v919, 0
      %v963 = vsel %vm271, %v920, 0
      %v966 = vsel %vm271, %v921, 0
      %v969 = vsel %vm271, %v922, 0
      %v972 = vsel %vm271, %v923, 0
      %v975 = vsel %vm271, %v924, 0
      %v978 = vsel %vm271, %v925, 0
      %v981 = vsel %vm271, %v926, 0
      %v984 = vsel %vm271, %v927, 0
      %v987 = vsel %vm271, %v928, 0
      %v990 = vsel %vm271, %v929, 0
      %v993 = vsel %vm271, %v930, 0
      %v996 = vsel %vm271, %v931, 0
      %v999 = vsel %vm271, %v932, 0
      %v1002 = vsel %vm271, %v933, 0
      %v1005 = vsel %vm271, %v934, 0
      %v1008 = vsel %vm271, %v935, 0
      %v1011 = vsel %vm271, %v936, 0
      %v1014 = vsel %vm271, %v937, 0
      %v1017 = vsel %vm271, %v938, 0
      %v1020 = vsel %vm271, %v939, 0
      %v1023 = vsel %vm271, %v940, 0
      %v1026 = vsel %vm271, %v941, 0
      %v1029 = vsel %vm271, %v942, 0
      %v1032 = vsel %vm271, %v943, 0
      %v1035 = vsel %vm271, %v944, 0
      %v1038 = vsel %vm271, %v945, 0
      %v1041 = vsel %vm271, %v946, 0
      %v1044 = vsel %vm271, %v947, 0
      %v1047 = vsel %vm271, %v948, 0
      %1049 = vmatprep.subr.mxu0 0.0
      %1050 = vmatpush1.msra.mxu0 %v950
      %1051 = vmatprep.subr.mxu0 0.0
      %1052 = vmatpush1.msra.mxu0 %v951
      %1053 = vmatprep.subr.mxu0 0.0
      %1054 = vmatpush1.msra.mxu0 %v952
      %1055 = vmatprep.subr.mxu0 0.0
      %1056 = vmatpush1.msra.mxu0 0.0
      %1057 = vmatprep.subr.mxu0 0.0
      %1058 = vmatpush1.msra.mxu0 0.0
      %1059 = vmatprep.subr.mxu0 0.0
      %1060 = vmatpush1.msra.mxu0 0.0
      %1061 = vmatprep.subr.mxu0 0.0
      %1062 = vmatpush1.msra.mxu0 0.0
      %1063 = vmatprep.subr.mxu0 0.0
      %1064 = vmatpush1.msra.mxu0 0.0
      %1065 = vmatprep.subr.mxu0 0.0
      %1066 = vmatpush1.msra.mxu0 0.0
      %1067 = vmatprep.subr.mxu0 0.0
      %1068 = vmatpush1.msra.mxu0 0.0
      %1069 = vmatprep.subr.mxu0 0.0
      %1070 = vmatpush1.msra.mxu0 0.0
      %1071 = vmatprep.subr.mxu0 0.0
      %1072 = vmatpush1.msra.mxu0 0.0
      %1073 = vmatprep.subr.mxu0 0.0
      %1074 = vmatpush1.msra.mxu0 0.0
      %1075 = vmatprep.subr.mxu0 0.0
      %1076 = vmatpush1.msra.mxu0 0.0
      %1077 = vmatprep.subr.mxu0 0.0
      %1078 = vmatpush1.msra.mxu0 0.0
      %1079 = vmatprep.subr.mxu0 0.0
      %1080 = vmatpush1.msra.mxu0 0.0
      %1081 = vmatprep.subr.mxu0 0.0
      %1082 = vmatpush1.msra.mxu0 0.0
      %1083 = vmatprep.subr.mxu0 0.0
      %1084 = vmatpush1.msra.mxu0 0.0
      %1085 = vmatprep.subr.mxu0 0.0
      %1086 = vmatpush1.msra.mxu0 0.0
      %1087 = vmatprep.subr.mxu0 0.0
      %1088 = vmatpush1.msra.mxu0 0.0
      %1089 = vmatprep.subr.mxu0 0.0
      %1090 = vmatpush1.msra.mxu0 0.0
      %1091 = vmatprep.subr.mxu0 0.0
      %1092 = vmatpush1.msra.mxu0 0.0
      %1093 = vmatprep.subr.mxu0 0.0
      %1094 = vmatpush1.msra.mxu0 0.0
      %1095 = vmatprep.subr.mxu0 0.0
      %1096 = vmatpush1.msra.mxu0 0.0
      %1097 = vmatprep.subr.mxu0 0.0
      %1098 = vmatpush1.msra.mxu0 0.0
      %1099 = vmatprep.subr.mxu0 0.0
      %1100 = vmatpush1.msra.mxu0 0.0
      %1101 = vmatprep.subr.mxu0 0.0
      %1102 = vmatpush1.msra.mxu0 0.0
      %1103 = vmatprep.subr.mxu0 0.0
      %1104 = vmatpush1.msra.mxu0 0.0
      %1105 = vmatprep.subr.mxu0 0.0
      %1106 = vmatpush1.msra.mxu0 0.0
      %1107 = vmatprep.subr.mxu0 0.0
      %1108 = vmatpush1.msra.mxu0 0.0
      %1109 = vmatprep.subr.mxu0 0.0
      %1110 = vmatpush1.msra.mxu0 0.0
      %1111 = vmatprep.subr.mxu0 0.0
      %1112 = vmatpush1.msra.mxu0 0.0
      %1113 = vmatprep.mubr.f32.mxu0 0.0
      %1114 = vmatmul.mubr.f32.gmra.mrb[0].mxu0 %v954
      %v1115 = vpop.f32.mrb[0].mxu0
      %v1116 = vadd.f32 0.0, %v1115
      %v1117 = vpop.f32.mrb[0].mxu0
      %1118 = vmatprep.mubr.f32.mxu0 0.0
      %1119 = vmatmul.mubr.f32.gmra.mrb[0].mxu0 %v957
      %v1120 = vpop.f32.mrb[0].mxu0
      %v1121 = vadd.f32 0.0, %v1120
      %v1122 = vpop.f32.mrb[0].mxu0
      %1123 = vmatprep.mubr.f32.mxu0 0.0
      %1124 = vmatmul.mubr.f32.gmra.mrb[0].mxu0 %v960
      %v1125 = vpop.f32.mrb[0].mxu0
      %v1126 = vadd.f32 0.0, %v1125
      %v1127 = vpop.f32.mrb[0].mxu0
      %1128 = vmatprep.mubr.f32.mxu0 0.0
      %1129 = vmatmul.mubr.f32.gmra.mrb[0].mxu0 %v963
      %v1130 = vpop.f32.mrb[0].mxu0
      %v1131 = vadd.f32 0.0, %v1130
      %v1132 = vpop.f32.mrb[0].mxu0
      %1133 = vmatprep.mubr.f32.mxu0 0.0
      %1134 = vmatmul.mubr.f32.gmra.mrb[0].mxu0 %v966
      %v1135 = vpop.f32.mrb[0].mxu0
      %v1136 = vadd.f32 0.0, %v1135
      %v1137 = vpop.f32.mrb[0].mxu0
      %1138 = vmatprep.mubr.f32.mxu0 0.0
      %1139 = vmatmul.mubr.f32.gmra.mrb[0].mxu0 %v969
      %v1140 = vpop.f32.mrb[0].mxu0
      %v1141 = vadd.f32 0.0, %v1140
      %v1142 = vpop.f32.mrb[0].mxu0
      %1143 = vmatprep.mubr.f32.mxu0 0.0
      %1144 = vmatmul.mubr.f32.gmra.mrb[0].mxu0 %v972
      %v1145 = vpop.f32.mrb[0].mxu0
      %v1146 = vadd.f32 0.0, %v1145
      %v1147 = vpop.f32.mrb[0].mxu0
      %1148 = vmatprep.mubr.f32.mxu0 0.0
      %1149 = vmatmul.mubr.f32.gmra.mrb[0].mxu0 %v975
      %v1150 = vpop.f32.mrb[0].mxu0
      %v1151 = vadd.f32 0.0, %v1150
      %v1152 = vpop.f32.mrb[0].mxu0
      %1153 = vmatprep.mubr.f32.mxu0 0.0
      %1154 = vmatmul.mubr.f32.gmra.mrb[0].mxu0 %v978
      %v1155 = vpop.f32.mrb[0].mxu0
      %v1156 = vadd.f32 0.0, %v1155
      %v1157 = vpop.f32.mrb[0].mxu0
      %1158 = vmatprep.mubr.f32.mxu0 0.0
      %1159 = vmatmul.mubr.f32.gmra.mrb[0].mxu0 %v981
      %v1160 = vpop.f32.mrb[0].mxu0
      %v1161 = vadd.f32 0.0, %v1160
      %v1162 = vpop.f32.mrb[0].mxu0
      %1163 = vmatprep.mubr.f32.mxu0 0.0
      %1164 = vmatmul.mubr.f32.gmra.mrb[0].mxu0 %v984
      %v1165 = vpop.f32.mrb[0].mxu0
      %v1166 = vadd.f32 0.0, %v1165
      %v1167 = vpop.f32.mrb[0].mxu0
      %1168 = vmatprep.mubr.f32.mxu0 0.0
      %1169 = vmatmul.mubr.f32.gmra.mrb[0].mxu0 %v987
      %v1170 = vpop.f32.mrb[0].mxu0
      %v1171 = vadd.f32 0.0, %v1170
      %v1172 = vpop.f32.mrb[0].mxu0
      %1173 = vmatprep.mubr.f32.mxu0 0.0
      %1174 = vmatmul.mubr.f32.gmra.mrb[0].mxu0 %v990
      %v1175 = vpop.f32.mrb[0].mxu0
      %v1176 = vadd.f32 0.0, %v1175
      %v1177 = vpop.f32.mrb[0].mxu0
      %1178 = vmatprep.mubr.f32.mxu0 0.0
      %1179 = vmatmul.mubr.f32.gmra.mrb[0].mxu0 %v993
      %v1180 = vpop.f32.mrb[0].mxu0
      %v1181 = vadd.f32 0.0, %v1180
      %v1182 = vpop.f32.mrb[0].mxu0
      %1183 = vmatprep.mubr.f32.mxu0 0.0
      %1184 = vmatmul.mubr.f32.gmra.mrb[0].mxu0 %v996
      %v1185 = vpop.f32.mrb[0].mxu0
      %v1186 = vadd.f32 0.0, %v1185
      %v1187 = vpop.f32.mrb[0].mxu0
      %1188 = vmatprep.mubr.f32.mxu0 0.0
      %1189 = vmatmul.mubr.f32.gmra.mrb[0].mxu0 %v999
      %v1190 = vpop.f32.mrb[0].mxu0
      %v1191 = vadd.f32 0.0, %v1190
      %v1192 = vpop.f32.mrb[0].mxu0
      %1193 = vmatprep.mubr.f32.mxu0 0.0
      %1194 = vmatmul.mubr.f32.gmra.mrb[0].mxu0 %v1002
      %v1195 = vpop.f32.mrb[0].mxu0
      %v1196 = vadd.f32 0.0, %v1195
      %v1197 = vpop.f32.mrb[0].mxu0
      %1198 = vmatprep.mubr.f32.mxu0 0.0
      %1199 = vmatmul.mubr.f32.gmra.mrb[0].mxu0 %v1005
      %v1200 = vpop.f32.mrb[0].mxu0
      %v1201 = vadd.f32 0.0, %v1200
      %v1202 = vpop.f32.mrb[0].mxu0
      %1203 = vmatprep.mubr.f32.mxu0 0.0
      %1204 = vmatmul.mubr.f32.gmra.mrb[0].mxu0 %v1008
      %v1205 = vpop.f32.mrb[0].mxu0
      %v1206 = vadd.f32 0.0, %v1205
      %v1207 = vpop.f32.mrb[0].mxu0
      %1208 = vmatprep.mubr.f32.mxu0 0.0
      %1209 = vmatmul.mubr.f32.gmra.mrb[0].mxu0 %v1011
      %v1210 = vpop.f32.mrb[0].mxu0
      %v1211 = vadd.f32 0.0, %v1210
      %v1212 = vpop.f32.mrb[0].mxu0
      %1213 = vmatprep.mubr.f32.mxu0 0.0
      %1214 = vmatmul.mubr.f32.gmra.mrb[0].mxu0 %v1014
      %v1215 = vpop.f32.mrb[0].mxu0
      %v1216 = vadd.f32 0.0, %v1215
      %v1217 = vpop.f32.mrb[0].mxu0
      %1218 = vmatprep.mubr.f32.mxu0 0.0
      %1219 = vmatmul.mubr.f32.gmra.mrb[0].mxu0 %v1017
      %v1220 = vpop.f32.mrb[0].mxu0
      %v1221 = vadd.f32 0.0, %v1220
      %v1222 = vpop.f32.mrb[0].mxu0
      %1223 = vmatprep.mubr.f32.mxu0 0.0
      %1224 = vmatmul.mubr.f32.gmra.mrb[0].mxu0 %v1020
      %v1225 = vpop.f32.mrb[0].mxu0
      %v1226 = vadd.f32 0.0, %v1225
      %v1227 = vpop.f32.mrb[0].mxu0
      %1228 = vmatprep.mubr.f32.mxu0 0.0
      %1229 = vmatmul.mubr.f32.gmra.mrb[0].mxu0 %v1023
      %v1230 = vpop.f32.mrb[0].mxu0
      %v1231 = vadd.f32 0.0, %v1230
      %v1232 = vpop.f32.mrb[0].mxu0
      %1233 = vmatprep.mubr.f32.mxu0 0.0
      %1234 = vmatmul.mubr.f32.gmra.mrb[0].mxu0 %v1026
      %v1235 = vpop.f32.mrb[0].mxu0
      %v1236 = vadd.f32 0.0, %v1235
      %v1237 = vpop.f32.mrb[0].mxu0
      %1238 = vmatprep.mubr.f32.mxu0 0.0
      %1239 = vmatmul.mubr.f32.gmra.mrb[0].mxu0 %v1029
      %v1240 = vpop.f32.mrb[0].mxu0
      %v1241 = vadd.f32 0.0, %v1240
      %v1242 = vpop.f32.mrb[0].mxu0
      %1243 = vmatprep.mubr.f32.mxu0 0.0
      %1244 = vmatmul.mubr.f32.gmra.mrb[0].mxu0 %v1032
      %v1245 = vpop.f32.mrb[0].mxu0
      %v1246 = vadd.f32 0.0, %v1245
      %v1247 = vpop.f32.mrb[0].mxu0
      %1248 = vmatprep.mubr.f32.mxu0 0.0
      %1249 = vmatmul.mubr.f32.gmra.mrb[0].mxu0 %v1035
      %v1250 = vpop.f32.mrb[0].mxu0
      %v1251 = vadd.f32 0.0, %v1250
      %v1252 = vpop.f32.mrb[0].mxu0
      %1253 = vmatprep.mubr.f32.mxu0 0.0
      %1254 = vmatmul.mubr.f32.gmra.mrb[0].mxu0 %v1038
      %v1255 = vpop.f32.mrb[0].mxu0
      %v1256 = vadd.f32 0.0, %v1255
      %v1257 = vpop.f32.mrb[0].mxu0
      %1258 = vmatprep.mubr.f32.mxu0 0.0
      %1259 = vmatmul.mubr.f32.gmra.mrb[0].mxu0 %v1041
      %v1260 = vpop.f32.mrb[0].mxu0
      %v1261 = vadd.f32 0.0, %v1260
      %v1262 = vpop.f32.mrb[0].mxu0
      %1263 = vmatprep.mubr.f32.mxu0 0.0
      %1264 = vmatmul.mubr.f32.gmra.mrb[0].mxu0 %v1044
      %v1265 = vpop.f32.mrb[0].mxu0
      %v1266 = vadd.f32 0.0, %v1265
      %v1267 = vpop.f32.mrb[0].mxu0
      %1268 = vmatprep.mubr.f32.mxu0 0.0
      %1269 = vmatmul.mubr.f32.gmra.mrb[0].mxu0 %v1047
      %v1270 = vpop.f32.mrb[0].mxu0
      %v1271 = vadd.f32 0.0, %v1270
      %v1272 = vpop.f32.mrb[0].mxu0
      %1273 = vdwg.mxu0
      %v1274 = vadd.f32 %v756, %v1116
      %v1275 = vadd.f32 %v761, %v1121
      %v1276 = vadd.f32 %v766, %v1126
      %v1277 = vadd.f32 %v771, %v1131
      %v1278 = vadd.f32 %v776, %v1136
      %v1279 = vadd.f32 %v781, %v1141
      %v1280 = vadd.f32 %v786, %v1146
      %v1281 = vadd.f32 %v791, %v1151
      %v1282 = vadd.f32 %v796, %v1156
      %v1283 = vadd.f32 %v801, %v1161
      %v1284 = vadd.f32 %v806, %v1166
      %v1285 = vadd.f32 %v811, %v1171
      %v1286 = vadd.f32 %v816, %v1176
      %v1287 = vadd.f32 %v821, %v1181
      %v1288 = vadd.f32 %v826, %v1186
      %v1289 = vadd.f32 %v831, %v1191
      %v1290 = vadd.f32 %v836, %v1196
      %v1291 = vadd.f32 %v841, %v1201
      %v1292 = vadd.f32 %v846, %v1206
      %v1293 = vadd.f32 %v851, %v1211
      %v1294 = vadd.f32 %v856, %v1216
      %v1295 = vadd.f32 %v861, %v1221
      %v1296 = vadd.f32 %v866, %v1226
      %v1297 = vadd.f32 %v871, %v1231
      %v1298 = vadd.f32 %v876, %v1236
      %v1299 = vadd.f32 %v881, %v1241
      %v1300 = vadd.f32 %v886, %v1246
      %v1301 = vadd.f32 %v891, %v1251
      %v1302 = vadd.f32 %v896, %v1256
      %v1303 = vadd.f32 %v901, %v1261
      %v1304 = vadd.f32 %v906, %v1266
      %v1305 = vadd.f32 %v911, %v1271
      %v1306 = vld [vmem:[%s2] sm:$0x1]
      %v1308 = vlaneseq
      %v1309 = vshrl.u32 %v1308, 7
      %v1310 = vsub.s32 0, %v1309
      %v1311 = vrot.slane %v1306, %v1310
      %v1313 = vadd.f32 %v1274, %v1311
      %v1314 = vadd.f32 %v1275, %v1311
      %v1315 = vadd.f32 %v1276, %v1311
      %v1316 = vadd.f32 %v1277, %v1311
      %v1317 = vadd.f32 %v1278, %v1311
      %v1318 = vadd.f32 %v1279, %v1311
      %v1319 = vadd.f32 %v1280, %v1311
      %v1320 = vadd.f32 %v1281, %v1311
      %v1321 = vadd.f32 %v1282, %v1311
      %v1322 = vadd.f32 %v1283, %v1311
      %v1323 = vadd.f32 %v1284, %v1311
      %v1324 = vadd.f32 %v1285, %v1311
      %v1325 = vadd.f32 %v1286, %v1311
      %v1326 = vadd.f32 %v1287, %v1311
      %v1327 = vadd.f32 %v1288, %v1311
      %v1328 = vadd.f32 %v1289, %v1311
      %v1329 = vadd.f32 %v1290, %v1311
      %v1330 = vadd.f32 %v1291, %v1311
      %v1331 = vadd.f32 %v1292, %v1311
      %v1332 = vadd.f32 %v1293, %v1311
      %v1333 = vadd.f32 %v1294, %v1311
      %v1334 = vadd.f32 %v1295, %v1311
      %v1335 = vadd.f32 %v1296, %v1311
      %v1336 = vadd.f32 %v1297, %v1311
      %v1337 = vadd.f32 %v1298, %v1311
      %v1338 = vadd.f32 %v1299, %v1311
      %v1339 = vadd.f32 %v1300, %v1311
      %v1340 = vadd.f32 %v1301, %v1311
      %v1341 = vadd.f32 %v1302, %v1311
      %v1342 = vadd.f32 %v1303, %v1311
      %v1343 = vadd.f32 %v1304, %v1311
      %v1344 = vadd.f32 %v1305, %v1311
      %v1345 = vmax.f32 %v1313, 0.0
      %v1346 = vmax.f32 %v1314, 0.0
      %v1347 = vmax.f32 %v1315, 0.0
      %v1348 = vmax.f32 %v1316, 0.0
      %v1349 = vmax.f32 %v1317, 0.0
      %v1350 = vmax.f32 %v1318, 0.0
      %v1351 = vmax.f32 %v1319, 0.0
      %v1352 = vmax.f32 %v1320, 0.0
      %v1353 = vmax.f32 %v1321, 0.0
      %v1354 = vmax.f32 %v1322, 0.0
      %v1355 = vmax.f32 %v1323, 0.0
      %v1356 = vmax.f32 %v1324, 0.0
      %v1357 = vmax.f32 %v1325, 0.0
      %v1358 = vmax.f32 %v1326, 0.0
      %v1359 = vmax.f32 %v1327, 0.0
      %v1360 = vmax.f32 %v1328, 0.0
      %v1361 = vmax.f32 %v1329, 0.0
      %v1362 = vmax.f32 %v1330, 0.0
      %v1363 = vmax.f32 %v1331, 0.0
      %v1364 = vmax.f32 %v1332, 0.0
      %v1365 = vmax.f32 %v1333, 0.0
      %v1366 = vmax.f32 %v1334, 0.0
      %v1367 = vmax.f32 %v1335, 0.0
      %v1368 = vmax.f32 %v1336, 0.0
      %v1369 = vmax.f32 %v1337, 0.0
      %v1370 = vmax.f32 %v1338, 0.0
      %v1371 = vmax.f32 %v1339, 0.0
      %v1372 = vmax.f32 %v1340, 0.0
      %v1373 = vmax.f32 %v1341, 0.0
      %v1374 = vmax.f32 %v1342, 0.0
      %v1375 = vmax.f32 %v1343, 0.0
      %v1376 = vmax.f32 %v1344, 0.0
      %1377 = vst [vmem:[%s192] sm:$0xff] %v1345
      %1378 = vst [vmem:[%s192 + $0x8] sm:$0xff] %v1346
      %1379 = vst [vmem:[%s192 + $0x10] sm:$0xff] %v1347
      %1380 = vst [vmem:[%s192 + $0x18] sm:$0xff] %v1348
      %1381 = vst [vmem:[%s192 + $0x20] sm:$0xff] %v1349
      %1382 = vst [vmem:[%s192 + $0x28] sm:$0xff] %v1350
      %1383 = vst [vmem:[%s192 + $0x30] sm:$0xff] %v1351
      %1384 = vst [vmem:[%s192 + $0x38] sm:$0xff] %v1352
      %1385 = vst [vmem:[%s192 + $0x40] sm:$0xff] %v1353
      %1386 = vst [vmem:[%s192 + $0x48] sm:$0xff] %v1354
      %1387 = vst [vmem:[%s192 + $0x50] sm:$0xff] %v1355
      %1388 = vst [vmem:[%s192 + $0x58] sm:$0xff] %v1356
      %1389 = vst [vmem:[%s192 + $0x60] sm:$0xff] %v1357
      %1390 = vst [vmem:[%s192 + $0x68] sm:$0xff] %v1358
      %1391 = vst [vmem:[%s192 + $0x70] sm:$0xff] %v1359
      %1392 = vst [vmem:[%s192 + $0x78] sm:$0xff] %v1360
      %1393 = vst [vmem:[%s192 + $0x80] sm:$0xff] %v1361
      %1394 = vst [vmem:[%s192 + $0x88] sm:$0xff] %v1362
      %1395 = vst [vmem:[%s192 + $0x90] sm:$0xff] %v1363
      %1396 = vst [vmem:[%s192 + $0x98] sm:$0xff] %v1364
      %1397 = vst [vmem:[%s192 + $0xa0] sm:$0xff] %v1365
      %1398 = vst [vmem:[%s192 + $0xa8] sm:$0xff] %v1366
      %1399 = vst [vmem:[%s192 + $0xb0] sm:$0xff] %v1367
      %1400 = vst [vmem:[%s192 + $0xb8] sm:$0xff] %v1368
      %1401 = vst [vmem:[%s192 + $0xc0] sm:$0xff] %v1369
      %1402 = vst [vmem:[%s192 + $0xc8] sm:$0xff] %v1370
      %1403 = vst [vmem:[%s192 + $0xd0] sm:$0xff] %v1371
      %1404 = vst [vmem:[%s192 + $0xd8] sm:$0xff] %v1372
      %1405 = vst [vmem:[%s192 + $0xe0] sm:$0xff] %v1373
      %1406 = vst [vmem:[%s192 + $0xe8] sm:$0xff] %v1374
      %1407 = vst [vmem:[%s192 + $0xf0] sm:$0xff] %v1375
      %1408 = vst [vmem:[%s192 + $0xf8] sm:$0xff] %v1376
      %s1409 = smul.u32 32, %s19
      %p1410 = scmp.lt.s32.totalorder %s18, 1
      %s1411 = scalar_select %p1410, %s18, 1
      %p1412 = scmp.lt.s32.totalorder %s1409, 31
      %s1413 = scalar_select %p1412, %s1409, 31
      %s1414 = smul.addr %s1411, 32
      %s1415 = sadd.s32 %s1413, %s1414
      %s1416 = smul.addr %s1415, 8
      %s1417 = scalar_lea.vmem %s3, %s1416
      // Predicated region
      $region33: #{repvgg_block_forward.1} parent=31 // pred_check
        %p1418 = pneg %p114
      $region34: #{repvgg_block_forward.1} parent=31 // pred_check_branch
        %1420 = sbr.rel (%p1418) target = $region36
      $region35: #{repvgg_block_forward.1} parent=31 // pred_region
        %s1421 = smul.u32 32, %s19
      $region36: #{repvgg_block_forward.1} parent=31 // pred_fallthru
        _
    $region32: #{repvgg_block_forward.1} parent=5 // pred_fallthru
      _
    %p1422 = scmp.le.s32.totalorder 2, %s9
    // Predicated region
    $region37: #{repvgg_block_forward.1} parent=5 // pred_check
      %p1423 = pneg %p1422
    $region38: #{repvgg_block_forward.1} parent=5 // pred_check_branch
      %1425 = sbr.rel (%p1423) target = $region40
    $region39: #{repvgg_block_forward.1} parent=5 // pred_region
      %s1426 = ssub.s32 %s9, 2
      // Predicated region
      $region41: #{repvgg_block_forward.1} parent=39 // pred_check
        %p1427 = pneg %p120
      $region42: #{repvgg_block_forward.1} parent=39 // pred_check_branch
        %1429 = sbr.rel (%p1427) target = $region44
      $region43: #{repvgg_block_forward.1} parent=39 // pred_region
        %s1430 = smul.u32 32, %s21
        %p1431 = scmp.lt.s32.totalorder %s20, 1
        %s1432 = scalar_select %p1431, %s20, 1
        %p1433 = scmp.lt.s32.totalorder %s1430, 31
        %s1434 = scalar_select %p1433, %s1430, 31
        %s1435 = smul.addr %s1432, 32
        %s1436 = sadd.s32 %s1434, %s1435
        %s1437 = smul.addr %s1436, 8
        %s1438 = scalar_lea.vmem %s3, %s1437
      $region44: #{repvgg_block_forward.1} parent=39 // pred_fallthru
        _
    $region40: #{repvgg_block_forward.1} parent=5 // pred_fallthru
      _
  $region6: #{repvgg_block_forward.1} parent=0 // loop_footer
    %s13 = sadd.s32 1, %s9
  $region7: #{repvgg_block_forward.1} parent=0 // loop_footer_branch
    %8 = sbr.rel target = $region3
  $region8: #{repvgg_block_forward.1} parent=0 // loop_exit
    _

</llo_original>
